<compile_context>
chip_gen: v7x
topology: tpu7x:2x2x1
jax: 0.10.0
libtpu: 0.0.40
codegen_flags: <defaults>
</compile_context>

<pallas_src>
import math

import jax
import jax.numpy as jnp
from jax import lax
from jax.experimental import pallas as pl
from jax.experimental.pallas import tpu as pltpu

# ----- configuration (matches the module's __init__ arguments) ---------------
B = 2
INPUT_DIM = 16
OUTPUT_DIM = 16
GROUPS = 2
DEGREE = 3
KH = KW = 3            # kernel_size=3
PAD = 1                # padding=1
H = W = 16             # spatial size (stride=1, dilation=1)
CIN_G = INPUT_DIM // GROUPS              # 8
COUT_G = OUTPUT_DIM // GROUPS            # 8
CIN_TOT = CIN_G * (1 + DEGREE)           # 32: gelu(x) + Taylor-basis channels
KTOT = KH * KW * CIN_TOT                 # 288: fused im2col contraction size
HW = H * W                               # 256 valid output positions
HP = H + 2 * PAD
WP = W + 2 * PAD
SPAT = HP * WP                           # 324 zero-padded grid positions
SP = 384                                 # SPAT rounded up to a lane multiple
NPOS = H * WP                            # 288 positions the conv is evaluated at
EPS = 1e-5                               # InstanceNorm2d default eps

# TODO(synk): dropout>0 (Dropout2d) has no deterministic Pallas forward
# equivalent; the configured module uses dropout=0.0 so it is a no-op.

_SQRT_HALF = 1.0 / math.sqrt(2.0)


def _erf(z):
    # Abramowitz & Stegun 7.1.26 (|err| <= 1.5e-7); uses only exp/mul/div/where
    # so it lowers cleanly on the TPU vector units.
    az = jnp.abs(z)
    t = 1.0 / (1.0 + 0.3275911 * az)
    poly = t * (0.254829592 + t * (-0.284496736 + t * (1.421413741
           + t * (-1.453152027 + t * 1.061405429))))
    e = 1.0 - poly * jnp.exp(-az * az)
    return jnp.where(z >= 0, e, -e)


def _gelu_exact(x):
    # exact (erf-based) GELU, matching nn.GELU() default
    return 0.5 * x * (1.0 + _erf(x * _SQRT_HALF))


# ----- Pallas kernel ----------------------------------------------------------
def _taylor_kan_kernel(prelu_ref, x_ref, ones_ref, vmask_ref, w_ref, o_ref):
    """One grid step = one channel group, all batch elements.

    x_ref     : (B, CIN_G, SP)     zero-padded, spatially flattened input
    ones_ref  : (CIN_G, SP)        degree-0 basis (1 inside, 0 in the pad ring/tail)
    vmask_ref : (COUT_G, NPOS)     1 at the 256 valid output positions
    w_ref     : (COUT_G, KTOT)     fused base+poly weights, im2col-flattened
    o_ref     : (B, COUT_G, NPOS)  conv+norm+PReLU output (wrapper keeps valid cols)
    """
    g = pl.program_id(0)
    slope = prelu_ref[g]                        # per-group PReLU slope

    w = w_ref[...]                              # (COUT_G, KTOT)
    ones_f = ones_ref[...]                      # (CIN_G, SP)
    vmask = vmask_ref[...]                      # (COUT_G, NPOS)
    inv_hw = 1.0 / float(HW)

    for b in range(B):                          # B=2, unrolled
        xb = x_ref[b]                           # (CIN_G, SP)

        # Feature stack along the sublane (channel) axis:
        #   [gelu(x), 1, tanh(x), ..., tanh(x)^(DEGREE-1)]
        # (tanh(0)=0 and gelu(0)=0, so the zero-pad ring stays zero except for
        #  the degree-0 channel, which uses the masked ones map.)
        t = jnp.tanh(xb)
        feats = [_gelu_exact(xb), ones_f]
        p = ones_f
        for _ in range(1, DEGREE):
            p = p * t
            feats.append(p)
        fb = jnp.concatenate(feats, axis=0)     # (CIN_TOT, SP)

        # im2col slab built once: each conv tap is a static lane slice of the
        # flattened (tail-padded) feature slab; rows are tap-major to match w.
        taps = []
        for kh in range(KH):
            for kw in range(KW):
                s = kh * WP + kw
                taps.append(fb[:, s:s + NPOS])  # (CIN_TOT, NPOS)
        slab = jnp.concatenate(taps, axis=0)    # (KTOT, NPOS)

        # Fused base+poly convolution: a single K=288 MXU matmul (f32 acc).
        res = jnp.dot(w, slab, preferred_element_type=jnp.float32)  # (COUT_G, NPOS)

        # InstanceNorm2d (affine=False, biased variance over the 256 valid
        # spatial positions) followed by the per-group PReLU.
        mean = jnp.sum(res * vmask, axis=1, keepdims=True) * inv_hw
        cen = res - mean
        var = jnp.sum(cen * cen * vmask, axis=1, keepdims=True) * inv_hw
        y = cen * lax.rsqrt(var + EPS)
        y = jnp.where(y > 0, y, slope * y)
        o_ref[b] = y.astype(o_ref.dtype)


# ----- wrapper ----------------------------------------------------------------
def taylor_kan_conv2d(x_nchw, w_base, w_poly, prelu_a):
    """x_nchw: (B, INPUT_DIM, H, W) f32 -> (B, OUTPUT_DIM, H, W) f32."""
    f32 = jnp.float32

    # NCHW -> (G, B, CIN_G, HP, WP) -> flatten spatial -> pad tail to SP lanes.
    xg = x_nchw.reshape(B, GROUPS, CIN_G, H, W).transpose(1, 0, 2, 3, 4)
    xg = jnp.pad(xg, ((0, 0), (0, 0), (0, 0), (PAD, PAD), (PAD, PAD)))
    xg = xg.reshape(GROUPS, B, CIN_G, SPAT)
    xg = jnp.pad(xg, ((0, 0), (0, 0), (0, 0), (0, SP - SPAT)))

    # Degree-0 basis map: 1 inside the image, 0 in the zero-pad ring (Conv2d
    # zero-pads the poly features, so the constant channel is 0 there) and in
    # the flattening tail.
    ones_map = jnp.pad(jnp.ones((CIN_G, H, W), f32),
                       ((0, 0), (PAD, PAD), (PAD, PAD)))
    ones_map = jnp.pad(ones_map.reshape(CIN_G, SPAT), ((0, 0), (0, SP - SPAT)))

    # Valid-position mask for the NPOS = H*WP conv evaluation grid.
    vmask = jnp.pad(jnp.ones((COUT_G, H, W), f32),
                    ((0, 0), (0, 0), (0, WP - W))).reshape(COUT_G, NPOS)

    # Fuse base + poly conv weights into the kernel's im2col layout:
    #   K index = (kh*KW + kw)*CIN_TOT + f, with
    #     f in [0, CIN_G)          -> base (gelu) channel c
    #     f = CIN_G + d*CIN_G + c  -> Taylor degree d of channel c
    w_poly_r = w_poly.reshape(GROUPS, COUT_G, CIN_G, DEGREE, KH, KW)
    w_poly_r = w_poly_r.transpose(0, 1, 3, 2, 4, 5).reshape(
        GROUPS, COUT_G, CIN_G * DEGREE, KH, KW)
    w_comb = jnp.concatenate([w_base, w_poly_r], axis=2)  # (G,Cout,CIN_TOT,KH,KW)
    w_flat = w_comb.transpose(0, 1, 3, 4, 2).reshape(GROUPS, COUT_G, KTOT)

    out = pl.pallas_call(
        _taylor_kan_kernel,
        out_shape=jax.ShapeDtypeStruct((GROUPS, B, COUT_G, NPOS), f32),
        grid=(GROUPS,),
        in_specs=[
            pl.BlockSpec(memory_space=pltpu.MemorySpace.SMEM),        # PReLU (G,)
            pl.BlockSpec((None, B, CIN_G, SP), lambda g: (g, 0, 0, 0)),
            pl.BlockSpec((CIN_G, SP), lambda g: (0, 0)),
            pl.BlockSpec((COUT_G, NPOS), lambda g: (0, 0)),
            pl.BlockSpec((None, COUT_G, KTOT), lambda g: (g, 0, 0)),
        ],
        out_specs=pl.BlockSpec((None, B, COUT_G, NPOS),
                               lambda g: (g, 0, 0, 0)),
        compiler_params=pltpu.CompilerParams(
            dimension_semantics=("parallel",)),
    )(prelu_a, xg, ones_map, vmask, w_flat)

    # (G, B, COUT_G, NPOS) -> keep valid columns -> NCHW (B, OUTPUT_DIM, H, W).
    out = out.reshape(GROUPS, B, COUT_G, H, WP)[..., :W]
    return out.transpose(1, 0, 2, 3, 4).reshape(B, OUTPUT_DIM, H, W)


# ----- pure-JAX reference (semantics check) -----------------------------------
def reference(x, w_base, w_poly, prelu_a):
    dn = ('NCHW', 'OIHW', 'NCHW')
    pad = [(PAD, PAD), (PAD, PAD)]
    outs = []
    for g in range(GROUPS):
        xg = x[:, g * CIN_G:(g + 1) * CIN_G]
        base = lax.conv_general_dilated(jax.nn.gelu(xg, approximate=False),
                                        w_base[g], (1, 1), pad,
                                        dimension_numbers=dn,
                                        precision=lax.Precision.HIGHEST)
        t = jnp.tanh(xg)
        basis = [jnp.ones_like(xg)]
        for _ in range(1, DEGREE):
            basis.append(basis[-1] * t)
        poly_feat = jnp.stack(basis, axis=2).reshape(B, CIN_G * DEGREE, H, W)
        poly = lax.conv_general_dilated(poly_feat, w_poly[g], (1, 1), pad,
                                        dimension_numbers=dn,
                                        precision=lax.Precision.HIGHEST)
        comb = base + poly
        mean = comb.mean(axis=(2, 3), keepdims=True)
        var = ((comb - mean) ** 2).mean(axis=(2, 3), keepdims=True)
        y = (comb - mean) / jnp.sqrt(var + EPS)
        y = jnp.where(y > 0, y, prelu_a[g] * y)
        outs.append(y)
    return jnp.concatenate(outs, axis=1)


# ----- main -------------------------------------------------------------------
if __name__ == "__main__":
    key = jax.random.PRNGKey(0)
    k1, k2, k3 = jax.random.split(key, 3)

    # kaiming_uniform_(nonlinearity='linear'): bound = sqrt(3 / fan_in)
    fan_in_base = CIN_G * KH * KW
    b_base = math.sqrt(3.0 / fan_in_base)
    w_base = jax.random.uniform(k1, (GROUPS, COUT_G, CIN_G, KH, KW),
                                jnp.float32, -b_base, b_base)
    fan_in_poly = CIN_G * DEGREE * KH * KW
    b_poly = math.sqrt(3.0 / fan_in_poly)
    w_poly = jax.random.uniform(k2, (GROUPS, COUT_G, CIN_G * DEGREE, KH, KW),
                                jnp.float32, -b_poly, b_poly)
    prelu_a = jnp.full((GROUPS,), 0.25, jnp.float32)   # nn.PReLU() default init

    x = jax.random.normal(k3, (B, INPUT_DIM, H, W), jnp.float32)

    y = jax.block_until_ready(taylor_kan_conv2d(x, w_base, w_poly, prelu_a))

    y_ref = reference(x, w_base, w_poly, prelu_a)
    err = float(jnp.max(jnp.abs(y - y_ref)))
    assert y.shape == (B, OUTPUT_DIM, H, W), y.shape
    assert err < 1e-3, f"max abs error {err}"

    print("KERNEL_OK")
</pallas_src>

<mosaic_0001>
module attributes {stable_mosaic.version = 11 : i64} {
  func.func @_taylor_kan_kernel(%arg0: i32, %arg1: memref<2xf32, #tpu.memory_space<smem>>, %arg2: memref<1x2x8x384xf32, #tpu.memory_space<vmem>>, %arg3: memref<8x384xf32, #tpu.memory_space<vmem>>, %arg4: memref<8x288xf32, #tpu.memory_space<vmem>>, %arg5: memref<1x8x288xf32, #tpu.memory_space<vmem>>, %arg6: memref<1x2x8x288xf32, #tpu.memory_space<vmem>>) attributes {dimension_semantics = [#tpu.dimension_semantics<parallel>], iteration_bounds = array<i64: 2>, scalar_prefetch = 0 : i64, scratch_operands = 0 : i64, tpu.core_type = #tpu.core_type<tc>, window_params = [{transform_indices = @transform_0, window_bounds = array<i64: 2>}, {transform_indices = @transform_1, window_bounds = array<i64: 1, 2, 8, 384>}, {pipeline_mode = #tpu.pipeline_mode<synchronous>, transform_indices = @transform_2, window_bounds = array<i64: 8, 384>}, {pipeline_mode = #tpu.pipeline_mode<synchronous>, transform_indices = @transform_3, window_bounds = array<i64: 8, 288>}, {transform_indices = @transform_4, window_bounds = array<i64: 1, 8, 288>}, {transform_indices = @transform_5, window_bounds = array<i64: 1, 2, 8, 288>}]} {
    %0 = arith.index_cast %arg0 : i32 to index
    %1 = memref.load %arg1[%0] : memref<2xf32, #tpu.memory_space<smem>>
    %c0 = arith.constant 0 : index
    %c0_0 = arith.constant 0 : index
    %c0_1 = arith.constant 0 : index
    %2 = vector.load %arg5[%c0, %c0_0, %c0_1] : memref<1x8x288xf32, #tpu.memory_space<vmem>>, vector<1x8x288xf32>
    %3 = vector.shape_cast %2 : vector<1x8x288xf32> to vector<8x288xf32>
    %c0_2 = arith.constant 0 : index
    %c0_3 = arith.constant 0 : index
    %4 = vector.load %arg3[%c0_2, %c0_3] : memref<8x384xf32, #tpu.memory_space<vmem>>, vector<8x384xf32>
    %c0_4 = arith.constant 0 : index
    %c0_5 = arith.constant 0 : index
    %5 = vector.load %arg4[%c0_4, %c0_5] : memref<8x288xf32, #tpu.memory_space<vmem>>, vector<8x288xf32>
    %c0_6 = arith.constant 0 : index
    %c0_7 = arith.constant 0 : index
    %c0_8 = arith.constant 0 : index
    %c0_9 = arith.constant 0 : index
    %6 = vector.load %arg2[%c0_6, %c0_7, %c0_8, %c0_9] : memref<1x2x8x384xf32, #tpu.memory_space<vmem>>, vector<1x1x8x384xf32>
    %7 = vector.shape_cast %6 : vector<1x1x8x384xf32> to vector<8x384xf32>
    %8 = math.tanh %7 : vector<8x384xf32>
    %cst = arith.constant 5.000000e-01 : f32
    %9 = vector.broadcast %cst : f32 to vector<8x384xf32>
    %10 = arith.mulf %9, %7 : vector<8x384xf32>
    %cst_10 = arith.constant 0.707106769 : f32
    %11 = vector.broadcast %cst_10 : f32 to vector<8x384xf32>
    %12 = arith.mulf %7, %11 : vector<8x384xf32>
    %13 = math.absf %12 : vector<8x384xf32>
    %cst_11 = arith.constant 0.327591091 : f32
    %14 = vector.broadcast %cst_11 : f32 to vector<8x384xf32>
    %15 = arith.mulf %14, %13 : vector<8x384xf32>
    %cst_12 = arith.constant 1.000000e+00 : f32
    %16 = vector.broadcast %cst_12 : f32 to vector<8x384xf32>
    %17 = arith.addf %16, %15 : vector<8x384xf32>
    %cst_13 = arith.constant 1.000000e+00 : f32
    %18 = vector.broadcast %cst_13 : f32 to vector<8x384xf32>
    %19 = arith.divf %18, %17 : vector<8x384xf32>
    %cst_14 = arith.constant 1.06140542 : f32
    %20 = vector.broadcast %cst_14 : f32 to vector<8x384xf32>
    %21 = arith.mulf %19, %20 : vector<8x384xf32>
    %cst_15 = arith.constant -1.45315206 : f32
    %22 = vector.broadcast %cst_15 : f32 to vector<8x384xf32>
    %23 = arith.addf %22, %21 : vector<8x384xf32>
    %24 = arith.mulf %19, %23 : vector<8x384xf32>
    %cst_16 = arith.constant 1.42141378 : f32
    %25 = vector.broadcast %cst_16 : f32 to vector<8x384xf32>
    %26 = arith.addf %25, %24 : vector<8x384xf32>
    %27 = arith.mulf %19, %26 : vector<8x384xf32>
    %cst_17 = arith.constant -0.284496725 : f32
    %28 = vector.broadcast %cst_17 : f32 to vector<8x384xf32>
    %29 = arith.addf %28, %27 : vector<8x384xf32>
    %30 = arith.mulf %19, %29 : vector<8x384xf32>
    %cst_18 = arith.constant 0.254829586 : f32
    %31 = vector.broadcast %cst_18 : f32 to vector<8x384xf32>
    %32 = arith.addf %31, %30 : vector<8x384xf32>
    %33 = arith.mulf %19, %32 : vector<8x384xf32>
    %cst_19 = arith.constant 0.000000e+00 : f32
    %34 = vector.broadcast %cst_19 : f32 to vector<8x384xf32>
    %35 = arith.subf %34, %13 : vector<8x384xf32>
    %36 = arith.mulf %35, %13 : vector<8x384xf32>
    %37 = math.exp %36 : vector<8x384xf32>
    %38 = arith.mulf %33, %37 : vector<8x384xf32>
    %cst_20 = arith.constant 1.000000e+00 : f32
    %39 = vector.broadcast %cst_20 : f32 to vector<8x384xf32>
    %40 = arith.subf %39, %38 : vector<8x384xf32>
    %cst_21 = arith.constant 0.000000e+00 : f32
    %41 = vector.broadcast %cst_21 : f32 to vector<8x384xf32>
    %42 = arith.cmpf oge, %12, %41 : vector<8x384xf32>
    %cst_22 = arith.constant 0.000000e+00 : f32
    %43 = vector.broadcast %cst_22 : f32 to vector<8x384xf32>
    %44 = arith.subf %43, %40 : vector<8x384xf32>
    %45 = arith.select %42, %40, %44 : vector<8x384xi1>, vector<8x384xf32>
    %cst_23 = arith.constant 1.000000e+00 : f32
    %46 = vector.broadcast %cst_23 : f32 to vector<8x384xf32>
    %47 = arith.addf %46, %45 : vector<8x384xf32>
    %48 = arith.mulf %10, %47 : vector<8x384xf32>
    %49 = arith.mulf %4, %8 : vector<8x384xf32>
    %50 = arith.mulf %49, %8 : vector<8x384xf32>
    %51 = tpu.concatenate %48, %4, %49, %50 in 0 : vector<8x384xf32>, vector<8x384xf32>, vector<8x384xf32>, vector<8x384xf32> -> vector<32x384xf32>
    %52 = vector.extract_strided_slice %51 {offsets = [0, 0], sizes = [32, 288], strides = [1, 1]} : vector<32x384xf32> to vector<32x288xf32>
    %53 = vector.extract_strided_slice %51 {offsets = [0, 1], sizes = [32, 288], strides = [1, 1]} : vector<32x384xf32> to vector<32x288xf32>
    %54 = vector.extract_strided_slice %51 {offsets = [0, 2], sizes = [32, 288], strides = [1, 1]} : vector<32x384xf32> to vector<32x288xf32>
    %55 = vector.extract_strided_slice %51 {offsets = [0, 18], sizes = [32, 288], strides = [1, 1]} : vector<32x384xf32> to vector<32x288xf32>
    %56 = vector.extract_strided_slice %51 {offsets = [0, 19], sizes = [32, 288], strides = [1, 1]} : vector<32x384xf32> to vector<32x288xf32>
    %57 = vector.extract_strided_slice %51 {offsets = [0, 20], sizes = [32, 288], strides = [1, 1]} : vector<32x384xf32> to vector<32x288xf32>
    %58 = vector.extract_strided_slice %51 {offsets = [0, 36], sizes = [32, 288], strides = [1, 1]} : vector<32x384xf32> to vector<32x288xf32>
    %59 = vector.extract_strided_slice %51 {offsets = [0, 37], sizes = [32, 288], strides = [1, 1]} : vector<32x384xf32> to vector<32x288xf32>
    %60 = vector.extract_strided_slice %51 {offsets = [0, 38], sizes = [32, 288], strides = [1, 1]} : vector<32x384xf32> to vector<32x288xf32>
    %61 = tpu.concatenate %52, %53, %54, %55, %56, %57, %58, %59, %60 in 0 : vector<32x288xf32>, vector<32x288xf32>, vector<32x288xf32>, vector<32x288xf32>, vector<32x288xf32>, vector<32x288xf32>, vector<32x288xf32>, vector<32x288xf32>, vector<32x288xf32> -> vector<288x288xf32>
    %cst_24 = arith.constant dense<0.000000e+00> : vector<8x288xf32>
    %62 = tpu.matmul %3, %61, %cst_24 {dimension_numbers = #tpu.dot_dimension_numbers<[1], [0], [0], [1], [0, 0, 1, 1], [], []>} : vector<8x288xf32>, vector<288x288xf32>, vector<8x288xf32> -> vector<8x288xf32>
    %63 = arith.mulf %62, %5 : vector<8x288xf32>
    %cst_25 = arith.constant dense<0.000000e+00> : vector<8xf32>
    %64 = vector.multi_reduction <add>, %63, %cst_25 [1] : vector<8x288xf32> to vector<8xf32>
    %65 = vector.shape_cast %64 : vector<8xf32> to vector<8x1xf32>
    %cst_26 = arith.constant 3.906250e-03 : f32
    %66 = vector.broadcast %cst_26 : f32 to vector<8x1xf32>
    %67 = arith.mulf %65, %66 : vector<8x1xf32>
    %68 = vector.broadcast %67 : vector<8x1xf32> to vector<8x288xf32>
    %69 = arith.subf %62, %68 : vector<8x288xf32>
    %70 = arith.mulf %69, %69 : vector<8x288xf32>
    %71 = arith.mulf %70, %5 : vector<8x288xf32>
    %cst_27 = arith.constant dense<0.000000e+00> : vector<8xf32>
    %72 = vector.multi_reduction <add>, %71, %cst_27 [1] : vector<8x288xf32> to vector<8xf32>
    %73 = vector.shape_cast %72 : vector<8xf32> to vector<8x1xf32>
    %cst_28 = arith.constant 3.906250e-03 : f32
    %74 = vector.broadcast %cst_28 : f32 to vector<8x1xf32>
    %75 = arith.mulf %73, %74 : vector<8x1xf32>
    %cst_29 = arith.constant 9.99999974E-6 : f32
    %76 = vector.broadcast %cst_29 : f32 to vector<8x1xf32>
    %77 = arith.addf %75, %76 : vector<8x1xf32>
    %78 = math.rsqrt %77 : vector<8x1xf32>
    %79 = vector.broadcast %78 : vector<8x1xf32> to vector<8x288xf32>
    %80 = arith.mulf %69, %79 : vector<8x288xf32>
    %cst_30 = arith.constant 0.000000e+00 : f32
    %81 = vector.broadcast %cst_30 : f32 to vector<8x288xf32>
    %82 = arith.cmpf ogt, %80, %81 : vector<8x288xf32>
    %83 = vector.broadcast %1 : f32 to vector<8x288xf32>
    %84 = arith.mulf %83, %80 : vector<8x288xf32>
    %85 = arith.select %82, %80, %84 : vector<8x288xi1>, vector<8x288xf32>
    %c0_31 = arith.constant 0 : index
    %c0_32 = arith.constant 0 : index
    %c0_33 = arith.constant 0 : index
    %c0_34 = arith.constant 0 : index
    %86 = vector.load %arg6[%c0_31, %c0_32, %c0_33, %c0_34] : memref<1x2x8x288xf32, #tpu.memory_space<vmem>>, vector<1x1x8x288xf32>
    %87 = vector.shape_cast %86 : vector<1x1x8x288xf32> to vector<8x288xf32>
    %88 = vector.shape_cast %85 : vector<8x288xf32> to vector<1x1x8x288xf32>
    tpu.vector_store %arg6[%c0_31, %c0_32, %c0_33, %c0_34], %88 {strides = array<i32>} : memref<1x2x8x288xf32, #tpu.memory_space<vmem>>, vector<1x1x8x288xf32>,
    %c0_35 = arith.constant 0 : index
    %c1 = arith.constant 1 : index
    %c0_36 = arith.constant 0 : index
    %c0_37 = arith.constant 0 : index
    %89 = vector.load %arg2[%c0_35, %c1, %c0_36, %c0_37] : memref<1x2x8x384xf32, #tpu.memory_space<vmem>>, vector<1x1x8x384xf32>
    %90 = vector.shape_cast %89 : vector<1x1x8x384xf32> to vector<8x384xf32>
    %91 = math.tanh %90 : vector<8x384xf32>
    %cst_38 = arith.constant 5.000000e-01 : f32
    %92 = vector.broadcast %cst_38 : f32 to vector<8x384xf32>
    %93 = arith.mulf %92, %90 : vector<8x384xf32>
    %cst_39 = arith.constant 0.707106769 : f32
    %94 = vector.broadcast %cst_39 : f32 to vector<8x384xf32>
    %95 = arith.mulf %90, %94 : vector<8x384xf32>
    %96 = math.absf %95 : vector<8x384xf32>
    %cst_40 = arith.constant 0.327591091 : f32
    %97 = vector.broadcast %cst_40 : f32 to vector<8x384xf32>
    %98 = arith.mulf %97, %96 : vector<8x384xf32>
    %cst_41 = arith.constant 1.000000e+00 : f32
    %99 = vector.broadcast %cst_41 : f32 to vector<8x384xf32>
    %100 = arith.addf %99, %98 : vector<8x384xf32>
    %cst_42 = arith.constant 1.000000e+00 : f32
    %101 = vector.broadcast %cst_42 : f32 to vector<8x384xf32>
    %102 = arith.divf %101, %100 : vector<8x384xf32>
    %cst_43 = arith.constant 1.06140542 : f32
    %103 = vector.broadcast %cst_43 : f32 to vector<8x384xf32>
    %104 = arith.mulf %102, %103 : vector<8x384xf32>
    %cst_44 = arith.constant -1.45315206 : f32
    %105 = vector.broadcast %cst_44 : f32 to vector<8x384xf32>
    %106 = arith.addf %105, %104 : vector<8x384xf32>
    %107 = arith.mulf %102, %106 : vector<8x384xf32>
    %cst_45 = arith.constant 1.42141378 : f32
    %108 = vector.broadcast %cst_45 : f32 to vector<8x384xf32>
    %109 = arith.addf %108, %107 : vector<8x384xf32>
    %110 = arith.mulf %102, %109 : vector<8x384xf32>
    %cst_46 = arith.constant -0.284496725 : f32
    %111 = vector.broadcast %cst_46 : f32 to vector<8x384xf32>
    %112 = arith.addf %111, %110 : vector<8x384xf32>
    %113 = arith.mulf %102, %112 : vector<8x384xf32>
    %cst_47 = arith.constant 0.254829586 : f32
    %114 = vector.broadcast %cst_47 : f32 to vector<8x384xf32>
    %115 = arith.addf %114, %113 : vector<8x384xf32>
    %116 = arith.mulf %102, %115 : vector<8x384xf32>
    %cst_48 = arith.constant 0.000000e+00 : f32
    %117 = vector.broadcast %cst_48 : f32 to vector<8x384xf32>
    %118 = arith.subf %117, %96 : vector<8x384xf32>
    %119 = arith.mulf %118, %96 : vector<8x384xf32>
    %120 = math.exp %119 : vector<8x384xf32>
    %121 = arith.mulf %116, %120 : vector<8x384xf32>
    %cst_49 = arith.constant 1.000000e+00 : f32
    %122 = vector.broadcast %cst_49 : f32 to vector<8x384xf32>
    %123 = arith.subf %122, %121 : vector<8x384xf32>
    %cst_50 = arith.constant 0.000000e+00 : f32
    %124 = vector.broadcast %cst_50 : f32 to vector<8x384xf32>
    %125 = arith.cmpf oge, %95, %124 : vector<8x384xf32>
    %cst_51 = arith.constant 0.000000e+00 : f32
    %126 = vector.broadcast %cst_51 : f32 to vector<8x384xf32>
    %127 = arith.subf %126, %123 : vector<8x384xf32>
    %128 = arith.select %125, %123, %127 : vector<8x384xi1>, vector<8x384xf32>
    %cst_52 = arith.constant 1.000000e+00 : f32
    %129 = vector.broadcast %cst_52 : f32 to vector<8x384xf32>
    %130 = arith.addf %129, %128 : vector<8x384xf32>
    %131 = arith.mulf %93, %130 : vector<8x384xf32>
    %132 = arith.mulf %4, %91 : vector<8x384xf32>
    %133 = arith.mulf %132, %91 : vector<8x384xf32>
    %134 = tpu.concatenate %131, %4, %132, %133 in 0 : vector<8x384xf32>, vector<8x384xf32>, vector<8x384xf32>, vector<8x384xf32> -> vector<32x384xf32>
    %135 = vector.extract_strided_slice %134 {offsets = [0, 0], sizes = [32, 288], strides = [1, 1]} : vector<32x384xf32> to vector<32x288xf32>
    %136 = vector.extract_strided_slice %134 {offsets = [0, 1], sizes = [32, 288], strides = [1, 1]} : vector<32x384xf32> to vector<32x288xf32>
    %137 = vector.extract_strided_slice %134 {offsets = [0, 2], sizes = [32, 288], strides = [1, 1]} : vector<32x384xf32> to vector<32x288xf32>
    %138 = vector.extract_strided_slice %134 {offsets = [0, 18], sizes = [32, 288], strides = [1, 1]} : vector<32x384xf32> to vector<32x288xf32>
    %139 = vector.extract_strided_slice %134 {offsets = [0, 19], sizes = [32, 288], strides = [1, 1]} : vector<32x384xf32> to vector<32x288xf32>
    %140 = vector.extract_strided_slice %134 {offsets = [0, 20], sizes = [32, 288], strides = [1, 1]} : vector<32x384xf32> to vector<32x288xf32>
    %141 = vector.extract_strided_slice %134 {offsets = [0, 36], sizes = [32, 288], strides = [1, 1]} : vector<32x384xf32> to vector<32x288xf32>
    %142 = vector.extract_strided_slice %134 {offsets = [0, 37], sizes = [32, 288], strides = [1, 1]} : vector<32x384xf32> to vector<32x288xf32>
    %143 = vector.extract_strided_slice %134 {offsets = [0, 38], sizes = [32, 288], strides = [1, 1]} : vector<32x384xf32> to vector<32x288xf32>
    %144 = tpu.concatenate %135, %136, %137, %138, %139, %140, %141, %142, %143 in 0 : vector<32x288xf32>, vector<32x288xf32>, vector<32x288xf32>, vector<32x288xf32>, vector<32x288xf32>, vector<32x288xf32>, vector<32x288xf32>, vector<32x288xf32>, vector<32x288xf32> -> vector<288x288xf32>
    %cst_53 = arith.constant dense<0.000000e+00> : vector<8x288xf32>
    %145 = tpu.matmul %3, %144, %cst_53 {dimension_numbers = #tpu.dot_dimension_numbers<[1], [0], [0], [1], [0, 0, 1, 1], [], []>} : vector<8x288xf32>, vector<288x288xf32>, vector<8x288xf32> -> vector<8x288xf32>
    %146 = arith.mulf %145, %5 : vector<8x288xf32>
    %cst_54 = arith.constant dense<0.000000e+00> : vector<8xf32>
    %147 = vector.multi_reduction <add>, %146, %cst_54 [1] : vector<8x288xf32> to vector<8xf32>
    %148 = vector.shape_cast %147 : vector<8xf32> to vector<8x1xf32>
    %cst_55 = arith.constant 3.906250e-03 : f32
    %149 = vector.broadcast %cst_55 : f32 to vector<8x1xf32>
    %150 = arith.mulf %148, %149 : vector<8x1xf32>
    %151 = vector.broadcast %150 : vector<8x1xf32> to vector<8x288xf32>
    %152 = arith.subf %145, %151 : vector<8x288xf32>
    %153 = arith.mulf %152, %152 : vector<8x288xf32>
    %154 = arith.mulf %153, %5 : vector<8x288xf32>
    %cst_56 = arith.constant dense<0.000000e+00> : vector<8xf32>
    %155 = vector.multi_reduction <add>, %154, %cst_56 [1] : vector<8x288xf32> to vector<8xf32>
    %156 = vector.shape_cast %155 : vector<8xf32> to vector<8x1xf32>
    %cst_57 = arith.constant 3.906250e-03 : f32
    %157 = vector.broadcast %cst_57 : f32 to vector<8x1xf32>
    %158 = arith.mulf %156, %157 : vector<8x1xf32>
    %cst_58 = arith.constant 9.99999974E-6 : f32
    %159 = vector.broadcast %cst_58 : f32 to vector<8x1xf32>
    %160 = arith.addf %158, %159 : vector<8x1xf32>
    %161 = math.rsqrt %160 : vector<8x1xf32>
    %162 = vector.broadcast %161 : vector<8x1xf32> to vector<8x288xf32>
    %163 = arith.mulf %152, %162 : vector<8x288xf32>
    %cst_59 = arith.constant 0.000000e+00 : f32
    %164 = vector.broadcast %cst_59 : f32 to vector<8x288xf32>
    %165 = arith.cmpf ogt, %163, %164 : vector<8x288xf32>
    %166 = vector.broadcast %1 : f32 to vector<8x288xf32>
    %167 = arith.mulf %166, %163 : vector<8x288xf32>
    %168 = arith.select %165, %163, %167 : vector<8x288xi1>, vector<8x288xf32>
    %c0_60 = arith.constant 0 : index
    %c1_61 = arith.constant 1 : index
    %c0_62 = arith.constant 0 : index
    %c0_63 = arith.constant 0 : index
    %169 = vector.load %arg6[%c0_60, %c1_61, %c0_62, %c0_63] : memref<1x2x8x288xf32, #tpu.memory_space<vmem>>, vector<1x1x8x288xf32>
    %170 = vector.shape_cast %169 : vector<1x1x8x288xf32> to vector<8x288xf32>
    %171 = vector.shape_cast %168 : vector<8x288xf32> to vector<1x1x8x288xf32>
    tpu.vector_store %arg6[%c0_60, %c1_61, %c0_62, %c0_63], %171 {strides = array<i32>} : memref<1x2x8x288xf32, #tpu.memory_space<vmem>>, vector<1x1x8x288xf32>,
    return
  }
  func.func @transform_0(%arg0: i32) -> i32 {
    %c0_i32 = arith.constant 0 : i32
    %c0_i32_0 = arith.constant 0 : i32
    return %c0_i32 : i32
  }
  func.func @transform_1(%arg0: i32) -> (i32, i32, i32, i32) {
    %c0_i32 = arith.constant 0 : i32
    %c0_i32_0 = arith.constant 0 : i32
    %c0_i32_1 = arith.constant 0 : i32
    %c0_i32_2 = arith.constant 0 : i32
    return %arg0, %c0_i32, %c0_i32_0, %c0_i32_1 : i32, i32, i32, i32
  }
  func.func @transform_2(%arg0: i32) -> (i32, i32) {
    %c0_i32 = arith.constant 0 : i32
    %c0_i32_0 = arith.constant 0 : i32
    %c0_i32_1 = arith.constant 0 : i32
    return %c0_i32, %c0_i32_0 : i32, i32
  }
  func.func @transform_3(%arg0: i32) -> (i32, i32) {
    %c0_i32 = arith.constant 0 : i32
    %c0_i32_0 = arith.constant 0 : i32
    %c0_i32_1 = arith.constant 0 : i32
    return %c0_i32, %c0_i32_0 : i32, i32
  }
  func.func @transform_4(%arg0: i32) -> (i32, i32, i32) {
    %c0_i32 = arith.constant 0 : i32
    %c0_i32_0 = arith.constant 0 : i32
    %c0_i32_1 = arith.constant 0 : i32
    return %arg0, %c0_i32, %c0_i32_0 : i32, i32, i32
  }
  func.func @transform_5(%arg0: i32) -> (i32, i32, i32, i32) {
    %c0_i32 = arith.constant 0 : i32
    %c0_i32_0 = arith.constant 0 : i32
    %c0_i32_1 = arith.constant 0 : i32
    %c0_i32_2 = arith.constant 0 : i32
    return %arg0, %c0_i32, %c0_i32_0, %c0_i32_1 : i32, i32, i32, i32
  }
}

</mosaic_0001>

<llo_original>
// kernel: tpu_custom_call.1
$region0: #{tpu_custom_call.1}
  #allocation0 [shape = 'u32[]', space=smem, size = 0x4, offset = 0x4, fixed_abs, tag = 'smem constant byte address 0x4 - core index']
  #allocation1 [shape = 'u32[144,128]{1,0:T(1,128)}', space=vmem, size = 0x12000, scoped, tag = 'internal scratch']
  %s0 = inlined_call_operand.hbm [shape: f32[2], index: 0, kind: input, shape index: {}]
  %s1 = inlined_call_operand.hbm [shape: f32[2,2,8,384], index: 1, kind: input, shape index: {}]
  %s2 = inlined_call_operand.hbm [shape: f32[8,384], index: 2, kind: input, shape index: {}]
  %s3 = inlined_call_operand.hbm [shape: f32[8,288], index: 3, kind: input, shape index: {}]
  %s4 = inlined_call_operand.hbm [shape: f32[2,8,288], index: 4, kind: input, shape index: {}]
  %s5 = inlined_call_operand.hbm [shape: f32[2,2,8,288], index: 5, kind: output, shape index: {}]
  %s6 = sld [smem:[#allocation0]]
  $region73: #{tpu_custom_call.1} parent=0
    _
  %s8 = ssub.s32 1, %s6
  %s9 = scalar_select 0, %s8, %s6
  $region1: #{tpu_custom_call.1} parent=0
    #allocation2 [shape = 'u8[512]{0}', space=smem, size = 0x200, scoped, tag = 'input window, operand 0, single buffered']
    #allocation3 [shape = 's32[2]{0}', space=sflag, size = 0x8, scoped, tag = 'scoped memory for tpu_custom_call.1']
    #allocation4 [shape = 's32[2]{0}', space=sflag, size = 0x8, scoped, tag = 'scoped memory for tpu_custom_call.1']
    #allocation5 [shape = 's32[2]{0}', space=sflag, size = 0x8, scoped, tag = 'scoped memory for tpu_custom_call.1']
    #allocation6 [shape = 'u8[49152]{0}', space=vmem, size = 0xc000, scoped, tag = 'input window, operand 1']
    #allocation7 [shape = 'u8[12288]{0}', space=vmem, size = 0x3000, scoped, tag = 'input window, operand 2, single buffered']
    #allocation8 [shape = 's32[1]{0}', space=sflag, size = 0x4, scoped, tag = 'scoped memory for tpu_custom_call.1']
    #allocation9 [shape = 'u8[12288]{0}', space=vmem, size = 0x3000, scoped, tag = 'input window, operand 3, single buffered']
    #allocation10 [shape = 'u8[24576]{0}', space=vmem, size = 0x6000, scoped, tag = 'input window, operand 4']
    #allocation11 [shape = 's32[2]{0}', space=sflag, size = 0x8, scoped, tag = 'scoped memory for tpu_custom_call.1']
    #allocation12 [shape = 'u8[49152]{0}', space=vmem, size = 0xc000, scoped, tag = 'output window, operand 0']
    %10 = vsyncpa [#allocation5], 0
    %11 = vsyncpa [#allocation3], 0
    %s12 = scalar_lea.sflag [#allocation3], 1
    %13 = vsyncpa %s12, 0
    %14 = vsyncpa [#allocation8], 0
    %15 = vsyncpa [#allocation11], 0
    %s16 = scalar_lea.sflag [#allocation11], 1
    %17 = vsyncpa %s16, 0
    %18 = vsyncpa [#allocation4], 0
    %s19 = scalar_lea.sflag [#allocation4], 1
    %20 = vsyncpa %s19, 0
    loop: start=0, step=1, limit=4
    $region2: #{tpu_custom_call.1} parent=1 // loop_pre_header
      _
    $region3: #{tpu_custom_call.1} parent=1 // loop_header
      %s22 = sphi 0, %s26
      %p23 = scmp.ge.s32.totalorder %s22, 4
      %s30 = sphi 0, %s30
      %s32 = sphi 0, %s30
      %s33 = sphi 0, %s32
      %s47 = sphi 0, %s33
      %s53 = sphi 0, %s55
      %s56 = sphi 0, %s53
      %s57 = sphi 0, %s56
      %s73 = sphi 0, %s57
      %s77 = sphi 0, %s77
      %s79 = sphi 0, %s77
      %s80 = sphi 0, %s79
      %s94 = sphi 0, %s80
      %s98 = sphi 0, %s98
      %s100 = sphi 0, %s98
      %s101 = sphi 0, %s100
      %s115 = sphi 0, %s101
      %s121 = sphi 0, %s123
      %s124 = sphi 0, %s121
      %s125 = sphi 0, %s124
      %s141 = sphi 0, %s125
      %s147 = sphi 0, %s149
      %s150 = sphi 0, %s147
      %s151 = sphi 0, %s150
      %s167 = sphi 0, %s151
    $region4: #{tpu_custom_call.1} parent=1 // loop_header_branch
      %25 = sbr.rel (%p23) target = $region8
    $region5: #{tpu_custom_call.1} parent=1 // loop_body
      %s27 = ssub.s32 %s22, 1
      %s28 = ssub.s32 %s22, 2
      %s29 = sadd.s32 %s22, 1
      %s31 = sadd.s32 %s30, 1
      %p34 = scmp.eq.s32.totalorder %s22, 1
      %p35 = scmp.ne.s32.totalorder %s30, %s32
      %p36 = scmp.eq.s32.totalorder %s22, 0
      %p37 = por %p35, %p36
      %p38 = scmp.ne.s32.totalorder %s30, %s32
      %p39 = scmp.eq.s32.totalorder %s27, 1
      %p40 = por %p38, %p39
      %p41 = scmp.ne.s32.totalorder %s32, %s33
      %p42 = scmp.eq.s32.totalorder %s27, 0
      %p43 = por %p41, %p42
      %p44 = scmp.ne.s32.totalorder %s32, %s33
      %p45 = scmp.eq.s32.totalorder %s28, 1
      %p46 = por %p44, %p45
      %p48 = scmp.ne.s32.totalorder %s33, %s47
      %p49 = scmp.eq.s32.totalorder %s28, 0
      %p50 = por %p48, %p49
      %s51 = ssub.s32 %s22, %s29
      %p52 = scmp.eq.s32.totalorder %s51, 0
      %s54 = sadd.s32 %s53, 1
      %s55 = scalar_select %p52, %s53, %s54
      %p58 = pneg %p52
      %p59 = scmp.eq.s32.totalorder %s22, 1
      %p60 = por %p58, %p59
      %p61 = scmp.ne.s32.totalorder %s53, %s56
      %p62 = scmp.eq.s32.totalorder %s22, 0
      %p63 = por %p61, %p62
      %p64 = scmp.ne.s32.totalorder %s53, %s56
      %p65 = scmp.eq.s32.totalorder %s27, 1
      %p66 = por %p64, %p65
      %p67 = scmp.ne.s32.totalorder %s56, %s57
      %p68 = scmp.eq.s32.totalorder %s27, 0
      %p69 = por %p67, %p68
      %p70 = scmp.ne.s32.totalorder %s56, %s57
      %p71 = scmp.eq.s32.totalorder %s28, 1
      %p72 = por %p70, %p71
      %p74 = scmp.ne.s32.totalorder %s57, %s73
      %p75 = scmp.eq.s32.totalorder %s28, 0
      %p76 = por %p74, %p75
      %s78 = sadd.s32 %s77, 1
      %p81 = scmp.eq.s32.totalorder %s22, 1
      %p82 = scmp.ne.s32.totalorder %s77, %s79
      %p83 = scmp.eq.s32.totalorder %s22, 0
      %p84 = por %p82, %p83
      %p85 = scmp.ne.s32.totalorder %s77, %s79
      %p86 = scmp.eq.s32.totalorder %s27, 1
      %p87 = por %p85, %p86
      %p88 = scmp.ne.s32.totalorder %s79, %s80
      %p89 = scmp.eq.s32.totalorder %s27, 0
      %p90 = por %p88, %p89
      %p91 = scmp.ne.s32.totalorder %s79, %s80
      %p92 = scmp.eq.s32.totalorder %s28, 1
      %p93 = por %p91, %p92
      %p95 = scmp.ne.s32.totalorder %s80, %s94
      %p96 = scmp.eq.s32.totalorder %s28, 0
      %p97 = por %p95, %p96
      %s99 = sadd.s32 %s98, 1
      %p102 = scmp.eq.s32.totalorder %s22, 1
      %p103 = scmp.ne.s32.totalorder %s98, %s100
      %p104 = scmp.eq.s32.totalorder %s22, 0
      %p105 = por %p103, %p104
      %p106 = scmp.ne.s32.totalorder %s98, %s100
      %p107 = scmp.eq.s32.totalorder %s27, 1
      %p108 = por %p106, %p107
      %p109 = scmp.ne.s32.totalorder %s100, %s101
      %p110 = scmp.eq.s32.totalorder %s27, 0
      %p111 = por %p109, %p110
      %p112 = scmp.ne.s32.totalorder %s100, %s101
      %p113 = scmp.eq.s32.totalorder %s28, 1
      %p114 = por %p112, %p113
      %p116 = scmp.ne.s32.totalorder %s101, %s115
      %p117 = scmp.eq.s32.totalorder %s28, 0
      %p118 = por %p116, %p117
      %s119 = ssub.s32 %s22, %s29
      %p120 = scmp.eq.s32.totalorder %s119, 0
      %s122 = sadd.s32 %s121, 1
      %s123 = scalar_select %p120, %s121, %s122
      %p126 = pneg %p120
      %p127 = scmp.eq.s32.totalorder %s22, 1
      %p128 = por %p126, %p127
      %p129 = scmp.ne.s32.totalorder %s121, %s124
      %p130 = scmp.eq.s32.totalorder %s22, 0
      %p131 = por %p129, %p130
      %p132 = scmp.ne.s32.totalorder %s121, %s124
      %p133 = scmp.eq.s32.totalorder %s27, 1
      %p134 = por %p132, %p133
      %p135 = scmp.ne.s32.totalorder %s124, %s125
      %p136 = scmp.eq.s32.totalorder %s27, 0
      %p137 = por %p135, %p136
      %p138 = scmp.ne.s32.totalorder %s124, %s125
      %p139 = scmp.eq.s32.totalorder %s28, 1
      %p140 = por %p138, %p139
      %p142 = scmp.ne.s32.totalorder %s125, %s141
      %p143 = scmp.eq.s32.totalorder %s28, 0
      %p144 = por %p142, %p143
      %s145 = ssub.s32 %s22, %s29
      %p146 = scmp.eq.s32.totalorder %s145, 0
      %s148 = sadd.s32 %s147, 1
      %s149 = scalar_select %p146, %s147, %s148
      %p152 = pneg %p146
      %p153 = scmp.eq.s32.totalorder %s22, 1
      %p154 = por %p152, %p153
      %p155 = scmp.ne.s32.totalorder %s147, %s150
      %p156 = scmp.eq.s32.totalorder %s22, 0
      %p157 = por %p155, %p156
      %p158 = scmp.ne.s32.totalorder %s147, %s150
      %p159 = scmp.eq.s32.totalorder %s27, 1
      %p160 = por %p158, %p159
      %p161 = scmp.ne.s32.totalorder %s150, %s151
      %p162 = scmp.eq.s32.totalorder %s27, 0
      %p163 = por %p161, %p162
      %p164 = scmp.ne.s32.totalorder %s150, %s151
      %p165 = scmp.eq.s32.totalorder %s28, 1
      %p166 = por %p164, %p165
      %p168 = scmp.ne.s32.totalorder %s151, %s167
      %p169 = scmp.eq.s32.totalorder %s28, 0
      %p170 = por %p168, %p169
      %p171 = scmp.le.s32.totalorder 1, %s22
      %p172 = scmp.lt.s32.totalorder %s22, 3
      %p173 = pnand %p171, %p172
      %p174 = pneg %p173
      // Predicated region
      $region9: #{tpu_custom_call.1} parent=5 // pred_check
        _
      $region10: #{tpu_custom_call.1} parent=5 // pred_check_branch
        %176 = sbr.rel (%p173) target = $region12
      $region11: #{tpu_custom_call.1} parent=5 // pred_region
        %s177 = ssub.s32 %s22, 1
        // Predicated region
        $region13: #{tpu_custom_call.1} parent=11 // pred_check
          %p178 = pneg %p43
        $region14: #{tpu_custom_call.1} parent=11 // pred_check_branch
          %180 = sbr.rel (%p178) target = $region16
        $region15: #{tpu_custom_call.1} parent=11 // pred_region
          %s182 = ssub.s32 16, 16
          %183 = vsyncadd [#allocation5], %s182
          %186 = dma.hbm_to_smem %s0, 16, [#allocation2], [#allocation5]
        $region16: #{tpu_custom_call.1} parent=11 // pred_fallthru
          _
        // Predicated region
        $region17: #{tpu_custom_call.1} parent=11 // pred_check
          %p187 = pneg %p90
        $region18: #{tpu_custom_call.1} parent=11 // pred_check_branch
          %189 = sbr.rel (%p187) target = $region20
        $region19: #{tpu_custom_call.1} parent=11 // pred_region
          %s191 = ssub.s32 384, 384
          %192 = vsyncadd [#allocation8], %s191
          %s194 = sshll.u32 [#allocation7], 4
          %s195 = int_to_ptr.vmem [resolvable:$true] %s194
          %197 = dma.hbm_to_vmem [thread:$0]  %s2, 384, %s195, [#allocation8]
        $region20: #{tpu_custom_call.1} parent=11 // pred_fallthru
          _
        // Predicated region
        $region21: #{tpu_custom_call.1} parent=11 // pred_check
          %p198 = pneg %p111
        $region22: #{tpu_custom_call.1} parent=11 // pred_check_branch
          %200 = sbr.rel (%p198) target = $region24
        $region23: #{tpu_custom_call.1} parent=11 // pred_region
          %s202 = ssub.s32 384, 384
          %203 = vsyncadd [#allocation8], %s202
          %s205 = sshll.u32 [#allocation9], 4
          %s206 = int_to_ptr.vmem [resolvable:$true] %s205
          %208 = dma.hbm_to_vmem [thread:$0]  %s3, 384, %s206, [#allocation8]
        $region24: #{tpu_custom_call.1} parent=11 // pred_fallthru
          _
      $region12: #{tpu_custom_call.1} parent=5 // pred_fallthru
        _
      %p209 = scmp.lt.s32.totalorder %s22, 2
      // Predicated region
      $region25: #{tpu_custom_call.1} parent=5 // pred_check
        %p210 = pneg %p209
      $region26: #{tpu_custom_call.1} parent=5 // pred_check_branch
        %212 = sbr.rel (%p210) target = $region28
      $region27: #{tpu_custom_call.1} parent=5 // pred_region
        // Predicated region
        $region29: #{tpu_custom_call.1} parent=27 // pred_check
          %p213 = pneg %p63
        $region30: #{tpu_custom_call.1} parent=27 // pred_check_branch
          %215 = sbr.rel (%p213) target = $region32
        $region31: #{tpu_custom_call.1} parent=27 // pred_region
          %s216 = sand.u32 %s53, 1
          %s217 = scalar_lea.sflag [#allocation3], %s216
          %s218 = sand.u32 %s53, 1
          %s219 = smul.addr %s218, 48
          %s220 = scalar_lea.vmem [#allocation6], %s219
          %s222 = ssub.s32 768, 768
          %223 = vsyncadd %s217, %s222
          %s224 = smul.addr %s22, 6
          %s225 = smul.addr %s224, 128
          %s226 = scalar_lea.hbm %s1, %s225
          %s227 = sshll.u32 %s220, 4
          %s228 = int_to_ptr.vmem [resolvable:$true] %s227
          %233 = dma.hbm_to_vmem [thread:$0]  %s226, 768, %s228, %s217, 384, 384, 24
        $region32: #{tpu_custom_call.1} parent=27 // pred_fallthru
          _
        // Predicated region
        $region33: #{tpu_custom_call.1} parent=27 // pred_check
          %p234 = pneg %p131
        $region34: #{tpu_custom_call.1} parent=27 // pred_check_branch
          %236 = sbr.rel (%p234) target = $region36
        $region35: #{tpu_custom_call.1} parent=27 // pred_region
          %s237 = sand.u32 %s121, 1
          %s238 = scalar_lea.sflag [#allocation11], %s237
          %s239 = sand.u32 %s121, 1
          %s240 = smul.addr %s239, 24
          %s241 = scalar_lea.vmem [#allocation10], %s240
          %s243 = ssub.s32 384, 384
          %244 = vsyncadd %s238, %s243
          %s245 = smul.addr %s22, 3
          %s246 = smul.addr %s245, 128
          %s247 = scalar_lea.hbm %s4, %s246
          %s249 = sshll.u32 %s241, 4
          %s250 = int_to_ptr.vmem [resolvable:$true] %s249
          %252 = dma.hbm_to_vmem [thread:$0]  %s247, 384, %s250, %s238
        $region36: #{tpu_custom_call.1} parent=27 // pred_fallthru
          _
      $region28: #{tpu_custom_call.1} parent=5 // pred_fallthru
        _
      %p253 = scmp.le.s32.totalorder 1, %s22
      %p254 = scmp.lt.s32.totalorder %s22, 3
      %p255 = pnand %p253, %p254
      %p256 = pneg %p255
      // Predicated region
      $region37: #{tpu_custom_call.1} parent=5 // pred_check
        _
      $region38: #{tpu_custom_call.1} parent=5 // pred_check_branch
        %258 = sbr.rel (%p255) target = $region40
      $region39: #{tpu_custom_call.1} parent=5 // pred_region
        %s259 = ssub.s32 %s22, 1
        // Predicated region
        $region41: #{tpu_custom_call.1} parent=39 // pred_check
          %p260 = pneg %p43
        $region42: #{tpu_custom_call.1} parent=39 // pred_check_branch
          %262 = sbr.rel (%p260) target = $region44
        $region43: #{tpu_custom_call.1} parent=39 // pred_region
          %263 = dma.done [#allocation5], 16
        $region44: #{tpu_custom_call.1} parent=39 // pred_fallthru
          _
        %s264 = sand.u32 %s56, 1
        %s265 = scalar_lea.sflag [#allocation3], %s264
        %s266 = sand.u32 %s56, 1
        %s267 = smul.addr %s266, 48
        %s268 = scalar_lea.vmem [#allocation6], %s267
        // Predicated region
        $region45: #{tpu_custom_call.1} parent=39 // pred_check
          %p269 = pneg %p69
        $region46: #{tpu_custom_call.1} parent=39 // pred_check_branch
          %271 = sbr.rel (%p269) target = $region48
        $region47: #{tpu_custom_call.1} parent=39 // pred_region
          %272 = dma.done %s265, 768
        $region48: #{tpu_custom_call.1} parent=39 // pred_fallthru
          _
        // Predicated region
        $region49: #{tpu_custom_call.1} parent=39 // pred_check
          %p273 = pneg %p90
        $region50: #{tpu_custom_call.1} parent=39 // pred_check_branch
          %275 = sbr.rel (%p273) target = $region52
        $region51: #{tpu_custom_call.1} parent=39 // pred_region
          %276 = dma.done [#allocation8], 384
        $region52: #{tpu_custom_call.1} parent=39 // pred_fallthru
          _
        // Predicated region
        $region53: #{tpu_custom_call.1} parent=39 // pred_check
          %p277 = pneg %p111
        $region54: #{tpu_custom_call.1} parent=39 // pred_check_branch
          %279 = sbr.rel (%p277) target = $region56
        $region55: #{tpu_custom_call.1} parent=39 // pred_region
          %280 = dma.done [#allocation8], 384
        $region56: #{tpu_custom_call.1} parent=39 // pred_fallthru
          _
        %s281 = sand.u32 %s124, 1
        %s282 = scalar_lea.sflag [#allocation11], %s281
        %s283 = sand.u32 %s124, 1
        %s284 = smul.addr %s283, 24
        %s285 = scalar_lea.vmem [#allocation10], %s284
        // Predicated region
        $region57: #{tpu_custom_call.1} parent=39 // pred_check
          %p286 = pneg %p137
        $region58: #{tpu_custom_call.1} parent=39 // pred_check_branch
          %288 = sbr.rel (%p286) target = $region60
        $region59: #{tpu_custom_call.1} parent=39 // pred_region
          %289 = dma.done %s282, 384
        $region60: #{tpu_custom_call.1} parent=39 // pred_fallthru
          _
        %290 = sfence
        %p291 = pneg %p43
        %p292 = pneg %p40
        %s293 = sand.u32 %s56, 1
        %s294 = scalar_lea.sflag [#allocation3], %s293
        %s295 = sand.u32 %s56, 1
        %s296 = smul.addr %s295, 48
        %s297 = scalar_lea.vmem [#allocation6], %s296
        %p298 = pneg %p69
        %p299 = pneg %p66
        %p300 = pneg %p90
        %p301 = pneg %p87
        %p302 = pneg %p111
        %p303 = pneg %p108
        %s304 = sand.u32 %s124, 1
        %s305 = scalar_lea.sflag [#allocation11], %s304
        %s306 = sand.u32 %s124, 1
        %s307 = smul.addr %s306, 24
        %s308 = scalar_lea.vmem [#allocation10], %s307
        %p309 = pneg %p137
        %p310 = pneg %p134
        %p311 = pneg %p163
        %p312 = pneg %p160
        %s313 = sand.u32 %s150, 1
        %s314 = scalar_lea.sflag [#allocation4], %s313
        %s315 = sand.u32 %s150, 1
        %s316 = smul.addr %s315, 48
        %s317 = scalar_lea.vmem [#allocation12], %s316
        %s318 = sld [smem:[#allocation2 + %s27]]
        %v319 = vld [vmem:[%s285] sm:$0xff]
        %v320 = vld [vmem:[%s285 + $0x8] sm:$0xff]
        %v321 = vld [vmem:[%s285 + $0x10] sm:$0xff]
        %v322 = vld [vmem:[#allocation7] sm:$0xff]
        %v323 = vld [vmem:[#allocation7 + $0x8] sm:$0xff]
        %v324 = vld [vmem:[#allocation7 + $0x10] sm:$0xff]
        %v325 = vld [vmem:[#allocation9] sm:$0xff]
        %v326 = vld [vmem:[#allocation9 + $0x8] sm:$0xff]
        %v327 = vld [vmem:[#allocation9 + $0x10] sm:$0xff]
        %v328 = vld [vmem:[%s268] sm:$0xff]
        %v329 = vld [vmem:[%s268 + $0x8] sm:$0xff]
        %v330 = vld [vmem:[%s268 + $0x10] sm:$0xff]
        %v331 = vtanh.pop %v328
        %v332 = vtanh.pop %v329
        %v333 = vtanh.pop %v330
        %v334 = vmul.f32 %v328, 0.5
        %v335 = vmul.f32 %v329, 0.5
        %v336 = vmul.f32 %v330, 0.5
        %v337 = vmul.f32 %v328, 0.70710677
        %v338 = vmul.f32 %v329, 0.70710677
        %v339 = vmul.f32 %v330, 0.70710677
        %v340 = vand.u32 2147483647, %v337
        %v341 = vand.u32 2147483647, %v338
        %v342 = vand.u32 2147483647, %v339
        %v343 = vmul.f32 %v340, 0.3275911
        %v344 = vmul.f32 %v341, 0.3275911
        %v345 = vmul.f32 %v342, 0.3275911
        %v346 = vadd.f32 %v343, 1.0
        %v347 = vadd.f32 %v344, 1.0
        %v348 = vadd.f32 %v345, 1.0
        %v349 = vrcp.pop %v346
        %v350 = vmul.f32 1.0, %v349
        %v351 = vrcp.pop %v347
        %v352 = vmul.f32 1.0, %v351
        %v353 = vrcp.pop %v348
        %v354 = vmul.f32 1.0, %v353
        %v355 = vmul.f32 %v350, 1.0614054
        %v356 = vmul.f32 %v352, 1.0614054
        %v357 = vmul.f32 %v354, 1.0614054
        %v358 = vadd.f32 %v355, -1.4531521
        %v359 = vadd.f32 %v356, -1.4531521
        %v360 = vadd.f32 %v357, -1.4531521
        %v361 = vmul.f32 %v350, %v358
        %v362 = vmul.f32 %v352, %v359
        %v363 = vmul.f32 %v354, %v360
        %v364 = vadd.f32 %v361, 1.4214138
        %v365 = vadd.f32 %v362, 1.4214138
        %v366 = vadd.f32 %v363, 1.4214138
        %v367 = vmul.f32 %v350, %v364
        %v368 = vmul.f32 %v352, %v365
        %v369 = vmul.f32 %v354, %v366
        %v370 = vadd.f32 %v367, -0.28449672
        %v371 = vadd.f32 %v368, -0.28449672
        %v372 = vadd.f32 %v369, -0.28449672
        %v373 = vmul.f32 %v350, %v370
        %v374 = vmul.f32 %v352, %v371
        %v375 = vmul.f32 %v354, %v372
        %v376 = vadd.f32 %v373, 0.2548296
        %v377 = vadd.f32 %v374, 0.2548296
        %v378 = vadd.f32 %v375, 0.2548296
        %v379 = vmul.f32 %v350, %v376
        %v380 = vmul.f32 %v352, %v377
        %v381 = vmul.f32 %v354, %v378
        %v382 = vsub.f32 0.0, %v340
        %v383 = vsub.f32 0.0, %v341
        %v384 = vsub.f32 0.0, %v342
        %v385 = vmul.f32 %v382, %v340
        %v386 = vmul.f32 %v383, %v341
        %v387 = vmul.f32 %v384, %v342
        %v388 = vmul.f32 %v385, 1.442695
        %v389 = vpow.pop %v388
        %v390 = vmul.f32 %v386, 1.442695
        %v391 = vpow.pop %v390
        %v392 = vmul.f32 %v387, 1.442695
        %v393 = vpow.pop %v392
        %v394 = vmul.f32 %v379, %v389
        %v395 = vmul.f32 %v380, %v391
        %v396 = vmul.f32 %v381, %v393
        %v397 = vsub.f32 1.0, %v394
        %v398 = vsub.f32 1.0, %v395
        %v399 = vsub.f32 1.0, %v396
        %vm400 = vcmp.ge.f32.partialorder %v337, 0.0
        %vm401 = vcmp.ge.f32.partialorder %v338, 0.0
        %vm402 = vcmp.ge.f32.partialorder %v339, 0.0
        %v403 = vsub.f32 0.0, %v397
        %v404 = vsub.f32 0.0, %v398
        %v405 = vsub.f32 0.0, %v399
        %v406 = vsel %vm400, %v397, %v403
        %v407 = vsel %vm401, %v398, %v404
        %v408 = vsel %vm402, %v399, %v405
        %v409 = vadd.f32 %v406, 1.0
        %v410 = vadd.f32 %v407, 1.0
        %v411 = vadd.f32 %v408, 1.0
        %v412 = vmul.f32 %v334, %v409
        %v413 = vmul.f32 %v335, %v410
        %v414 = vmul.f32 %v336, %v411
        %v415 = vmul.f32 %v322, %v331
        %v416 = vmul.f32 %v323, %v332
        %v417 = vmul.f32 %v324, %v333
        %v418 = vmul.f32 %v415, %v331
        %v419 = vmul.f32 %v416, %v332
        %v420 = vmul.f32 %v417, %v333
        %433 = vrot.lane.b32.xlu0 %v412, 127
        %v434 = vpop.permute.xlu0 %433
        %435 = vrot.lane.b32.xlu0 %v413, 127
        %v436 = vpop.permute.xlu0 %435
        %437 = vrot.lane.b32.xlu0 %v414, 127
        %v438 = vpop.permute.xlu0 %437
        %439 = vrot.lane.b32.xlu0 %v322, 127
        %v440 = vpop.permute.xlu0 %439
        %441 = vrot.lane.b32.xlu0 %v323, 127
        %v442 = vpop.permute.xlu0 %441
        %443 = vrot.lane.b32.xlu0 %v324, 127
        %v444 = vpop.permute.xlu0 %443
        %445 = vrot.lane.b32.xlu0 %v415, 127
        %v446 = vpop.permute.xlu0 %445
        %447 = vrot.lane.b32.xlu0 %v416, 127
        %v448 = vpop.permute.xlu0 %447
        %449 = vrot.lane.b32.xlu0 %v417, 127
        %v450 = vpop.permute.xlu0 %449
        %451 = vrot.lane.b32.xlu0 %v418, 127
        %v452 = vpop.permute.xlu0 %451
        %453 = vrot.lane.b32.xlu0 %v419, 127
        %v454 = vpop.permute.xlu0 %453
        %455 = vrot.lane.b32.xlu0 %v420, 127
        %v456 = vpop.permute.xlu0 %455
        %vm457 = vcmask 1039360
        %v458 = vsel %vm457, %v434, %v436
        %v459 = vsel %vm457, %v436, %v438
        %v460 = vsel %vm457, %v440, %v442
        %v461 = vsel %vm457, %v442, %v444
        %v462 = vsel %vm457, %v446, %v448
        %v463 = vsel %vm457, %v448, %v450
        %v464 = vsel %vm457, %v452, %v454
        %v465 = vsel %vm457, %v454, %v456
        %478 = vrot.lane.b32.xlu0 %v412, 126
        %v479 = vpop.permute.xlu0 %478
        %480 = vrot.lane.b32.xlu0 %v413, 126
        %v481 = vpop.permute.xlu0 %480
        %482 = vrot.lane.b32.xlu0 %v414, 126
        %v483 = vpop.permute.xlu0 %482
        %484 = vrot.lane.b32.xlu0 %v322, 126
        %v485 = vpop.permute.xlu0 %484
        %486 = vrot.lane.b32.xlu0 %v323, 126
        %v487 = vpop.permute.xlu0 %486
        %488 = vrot.lane.b32.xlu0 %v324, 126
        %v489 = vpop.permute.xlu0 %488
        %490 = vrot.lane.b32.xlu0 %v415, 126
        %v491 = vpop.permute.xlu0 %490
        %492 = vrot.lane.b32.xlu0 %v416, 126
        %v493 = vpop.permute.xlu0 %492
        %494 = vrot.lane.b32.xlu0 %v417, 126
        %v495 = vpop.permute.xlu0 %494
        %496 = vrot.lane.b32.xlu0 %v418, 126
        %v497 = vpop.permute.xlu0 %496
        %498 = vrot.lane.b32.xlu0 %v419, 126
        %v499 = vpop.permute.xlu0 %498
        %500 = vrot.lane.b32.xlu0 %v420, 126
        %v501 = vpop.permute.xlu0 %500
        %vm502 = vcmask 1031168
        %v503 = vsel %vm502, %v479, %v481
        %v504 = vsel %vm502, %v481, %v483
        %v505 = vsel %vm502, %v485, %v487
        %v506 = vsel %vm502, %v487, %v489
        %v507 = vsel %vm502, %v491, %v493
        %v508 = vsel %vm502, %v493, %v495
        %v509 = vsel %vm502, %v497, %v499
        %v510 = vsel %vm502, %v499, %v501
        %523 = vrot.lane.b32.xlu0 %v412, 110
        %v524 = vpop.permute.xlu0 %523
        %525 = vrot.lane.b32.xlu0 %v413, 110
        %v526 = vpop.permute.xlu0 %525
        %527 = vrot.lane.b32.xlu0 %v414, 110
        %v528 = vpop.permute.xlu0 %527
        %529 = vrot.lane.b32.xlu0 %v322, 110
        %v530 = vpop.permute.xlu0 %529
        %531 = vrot.lane.b32.xlu0 %v323, 110
        %v532 = vpop.permute.xlu0 %531
        %533 = vrot.lane.b32.xlu0 %v324, 110
        %v534 = vpop.permute.xlu0 %533
        %535 = vrot.lane.b32.xlu0 %v415, 110
        %v536 = vpop.permute.xlu0 %535
        %537 = vrot.lane.b32.xlu0 %v416, 110
        %v538 = vpop.permute.xlu0 %537
        %539 = vrot.lane.b32.xlu0 %v417, 110
        %v540 = vpop.permute.xlu0 %539
        %541 = vrot.lane.b32.xlu0 %v418, 110
        %v542 = vpop.permute.xlu0 %541
        %543 = vrot.lane.b32.xlu0 %v419, 110
        %v544 = vpop.permute.xlu0 %543
        %545 = vrot.lane.b32.xlu0 %v420, 110
        %v546 = vpop.permute.xlu0 %545
        %vm547 = vcmask 900096
        %v548 = vsel %vm547, %v524, %v526
        %v549 = vsel %vm547, %v526, %v528
        %v550 = vsel %vm547, %v530, %v532
        %v551 = vsel %vm547, %v532, %v534
        %v552 = vsel %vm547, %v536, %v538
        %v553 = vsel %vm547, %v538, %v540
        %v554 = vsel %vm547, %v542, %v544
        %v555 = vsel %vm547, %v544, %v546
        %568 = vrot.lane.b32.xlu0 %v412, 109
        %v569 = vpop.permute.xlu0 %568
        %570 = vrot.lane.b32.xlu0 %v413, 109
        %v571 = vpop.permute.xlu0 %570
        %572 = vrot.lane.b32.xlu0 %v414, 109
        %v573 = vpop.permute.xlu0 %572
        %574 = vrot.lane.b32.xlu0 %v322, 109
        %v575 = vpop.permute.xlu0 %574
        %576 = vrot.lane.b32.xlu0 %v323, 109
        %v577 = vpop.permute.xlu0 %576
        %578 = vrot.lane.b32.xlu0 %v324, 109
        %v579 = vpop.permute.xlu0 %578
        %580 = vrot.lane.b32.xlu0 %v415, 109
        %v581 = vpop.permute.xlu0 %580
        %582 = vrot.lane.b32.xlu0 %v416, 109
        %v583 = vpop.permute.xlu0 %582
        %584 = vrot.lane.b32.xlu0 %v417, 109
        %v585 = vpop.permute.xlu0 %584
        %586 = vrot.lane.b32.xlu0 %v418, 109
        %v587 = vpop.permute.xlu0 %586
        %588 = vrot.lane.b32.xlu0 %v419, 109
        %v589 = vpop.permute.xlu0 %588
        %590 = vrot.lane.b32.xlu0 %v420, 109
        %v591 = vpop.permute.xlu0 %590
        %vm592 = vcmask 891904
        %v593 = vsel %vm592, %v569, %v571
        %v594 = vsel %vm592, %v571, %v573
        %v595 = vsel %vm592, %v575, %v577
        %v596 = vsel %vm592, %v577, %v579
        %v597 = vsel %vm592, %v581, %v583
        %v598 = vsel %vm592, %v583, %v585
        %v599 = vsel %vm592, %v587, %v589
        %v600 = vsel %vm592, %v589, %v591
        %613 = vrot.lane.b32.xlu0 %v412, 108
        %v614 = vpop.permute.xlu0 %613
        %615 = vrot.lane.b32.xlu0 %v413, 108
        %v616 = vpop.permute.xlu0 %615
        %617 = vrot.lane.b32.xlu0 %v414, 108
        %v618 = vpop.permute.xlu0 %617
        %619 = vrot.lane.b32.xlu0 %v322, 108
        %v620 = vpop.permute.xlu0 %619
        %621 = vrot.lane.b32.xlu0 %v323, 108
        %v622 = vpop.permute.xlu0 %621
        %623 = vrot.lane.b32.xlu0 %v324, 108
        %v624 = vpop.permute.xlu0 %623
        %625 = vrot.lane.b32.xlu0 %v415, 108
        %v626 = vpop.permute.xlu0 %625
        %627 = vrot.lane.b32.xlu0 %v416, 108
        %v628 = vpop.permute.xlu0 %627
        %629 = vrot.lane.b32.xlu0 %v417, 108
        %v630 = vpop.permute.xlu0 %629
        %631 = vrot.lane.b32.xlu0 %v418, 108
        %v632 = vpop.permute.xlu0 %631
        %633 = vrot.lane.b32.xlu0 %v419, 108
        %v634 = vpop.permute.xlu0 %633
        %635 = vrot.lane.b32.xlu0 %v420, 108
        %v636 = vpop.permute.xlu0 %635
        %vm637 = vcmask 883712
        %v638 = vsel %vm637, %v614, %v616
        %v639 = vsel %vm637, %v616, %v618
        %v640 = vsel %vm637, %v620, %v622
        %v641 = vsel %vm637, %v622, %v624
        %v642 = vsel %vm637, %v626, %v628
        %v643 = vsel %vm637, %v628, %v630
        %v644 = vsel %vm637, %v632, %v634
        %v645 = vsel %vm637, %v634, %v636
        %658 = vrot.lane.b32.xlu0 %v412, 92
        %v659 = vpop.permute.xlu0 %658
        %660 = vrot.lane.b32.xlu0 %v413, 92
        %v661 = vpop.permute.xlu0 %660
        %662 = vrot.lane.b32.xlu0 %v414, 92
        %v663 = vpop.permute.xlu0 %662
        %664 = vrot.lane.b32.xlu0 %v322, 92
        %v665 = vpop.permute.xlu0 %664
        %666 = vrot.lane.b32.xlu0 %v323, 92
        %v667 = vpop.permute.xlu0 %666
        %668 = vrot.lane.b32.xlu0 %v324, 92
        %v669 = vpop.permute.xlu0 %668
        %670 = vrot.lane.b32.xlu0 %v415, 92
        %v671 = vpop.permute.xlu0 %670
        %672 = vrot.lane.b32.xlu0 %v416, 92
        %v673 = vpop.permute.xlu0 %672
        %674 = vrot.lane.b32.xlu0 %v417, 92
        %v675 = vpop.permute.xlu0 %674
        %676 = vrot.lane.b32.xlu0 %v418, 92
        %v677 = vpop.permute.xlu0 %676
        %678 = vrot.lane.b32.xlu0 %v419, 92
        %v679 = vpop.permute.xlu0 %678
        %680 = vrot.lane.b32.xlu0 %v420, 92
        %v681 = vpop.permute.xlu0 %680
        %vm682 = vcmask 752640
        %v683 = vsel %vm682, %v659, %v661
        %v684 = vsel %vm682, %v661, %v663
        %v685 = vsel %vm682, %v665, %v667
        %v686 = vsel %vm682, %v667, %v669
        %v687 = vsel %vm682, %v671, %v673
        %v688 = vsel %vm682, %v673, %v675
        %v689 = vsel %vm682, %v677, %v679
        %v690 = vsel %vm682, %v679, %v681
        %703 = vrot.lane.b32.xlu0 %v412, 91
        %v704 = vpop.permute.xlu0 %703
        %705 = vrot.lane.b32.xlu0 %v413, 91
        %v706 = vpop.permute.xlu0 %705
        %707 = vrot.lane.b32.xlu0 %v414, 91
        %v708 = vpop.permute.xlu0 %707
        %709 = vrot.lane.b32.xlu0 %v322, 91
        %v710 = vpop.permute.xlu0 %709
        %711 = vrot.lane.b32.xlu0 %v323, 91
        %v712 = vpop.permute.xlu0 %711
        %713 = vrot.lane.b32.xlu0 %v324, 91
        %v714 = vpop.permute.xlu0 %713
        %715 = vrot.lane.b32.xlu0 %v415, 91
        %v716 = vpop.permute.xlu0 %715
        %717 = vrot.lane.b32.xlu0 %v416, 91
        %v718 = vpop.permute.xlu0 %717
        %719 = vrot.lane.b32.xlu0 %v417, 91
        %v720 = vpop.permute.xlu0 %719
        %721 = vrot.lane.b32.xlu0 %v418, 91
        %v722 = vpop.permute.xlu0 %721
        %723 = vrot.lane.b32.xlu0 %v419, 91
        %v724 = vpop.permute.xlu0 %723
        %725 = vrot.lane.b32.xlu0 %v420, 91
        %v726 = vpop.permute.xlu0 %725
        %vm727 = vcmask 744448
        %v728 = vsel %vm727, %v704, %v706
        %v729 = vsel %vm727, %v706, %v708
        %v730 = vsel %vm727, %v710, %v712
        %v731 = vsel %vm727, %v712, %v714
        %v732 = vsel %vm727, %v716, %v718
        %v733 = vsel %vm727, %v718, %v720
        %v734 = vsel %vm727, %v722, %v724
        %v735 = vsel %vm727, %v724, %v726
        %748 = vrot.lane.b32.xlu0 %v412, 90
        %v749 = vpop.permute.xlu0 %748
        %750 = vrot.lane.b32.xlu0 %v413, 90
        %v751 = vpop.permute.xlu0 %750
        %752 = vrot.lane.b32.xlu0 %v414, 90
        %v753 = vpop.permute.xlu0 %752
        %754 = vrot.lane.b32.xlu0 %v322, 90
        %v755 = vpop.permute.xlu0 %754
        %756 = vrot.lane.b32.xlu0 %v323, 90
        %v757 = vpop.permute.xlu0 %756
        %758 = vrot.lane.b32.xlu0 %v324, 90
        %v759 = vpop.permute.xlu0 %758
        %760 = vrot.lane.b32.xlu0 %v415, 90
        %v761 = vpop.permute.xlu0 %760
        %762 = vrot.lane.b32.xlu0 %v416, 90
        %v763 = vpop.permute.xlu0 %762
        %764 = vrot.lane.b32.xlu0 %v417, 90
        %v765 = vpop.permute.xlu0 %764
        %766 = vrot.lane.b32.xlu0 %v418, 90
        %v767 = vpop.permute.xlu0 %766
        %768 = vrot.lane.b32.xlu0 %v419, 90
        %v769 = vpop.permute.xlu0 %768
        %770 = vrot.lane.b32.xlu0 %v420, 90
        %v771 = vpop.permute.xlu0 %770
        %vm772 = vcmask 736256
        %v773 = vsel %vm772, %v749, %v751
        %v774 = vsel %vm772, %v751, %v753
        %v775 = vsel %vm772, %v755, %v757
        %v776 = vsel %vm772, %v757, %v759
        %v777 = vsel %vm772, %v761, %v763
        %v778 = vsel %vm772, %v763, %v765
        %v779 = vsel %vm772, %v767, %v769
        %v780 = vsel %vm772, %v769, %v771
        %vm793 = vcmask 261120
        %v795 = vsel %vm793, %v321, 0
        %797 = vmatprep.subr.mxu0 %v413
        %798 = vmatpush1.msra.mxu0 %v412
        %799 = vmatprep.subr.mxu0 %v323
        %800 = vmatpush1.msra.mxu0 %v322
        %801 = vmatprep.subr.mxu0 %v416
        %802 = vmatpush1.msra.mxu0 %v415
        %803 = vmatprep.subr.mxu0 %v419
        %804 = vmatpush1.msra.mxu0 %v418
        %805 = vmatprep.subr.mxu0 %v459
        %806 = vmatpush1.msra.mxu0 %v458
        %807 = vmatprep.subr.mxu0 %v461
        %808 = vmatpush1.msra.mxu0 %v460
        %809 = vmatprep.subr.mxu0 %v463
        %810 = vmatpush1.msra.mxu0 %v462
        %811 = vmatprep.subr.mxu0 %v465
        %812 = vmatpush1.msra.mxu0 %v464
        %813 = vmatprep.subr.mxu0 %v504
        %814 = vmatpush1.msra.mxu0 %v503
        %815 = vmatprep.subr.mxu0 %v506
        %816 = vmatpush1.msra.mxu0 %v505
        %817 = vmatprep.subr.mxu0 %v508
        %818 = vmatpush1.msra.mxu0 %v507
        %819 = vmatprep.subr.mxu0 %v510
        %820 = vmatpush1.msra.mxu0 %v509
        %821 = vmatprep.subr.mxu0 %v549
        %822 = vmatpush1.msra.mxu0 %v548
        %823 = vmatprep.subr.mxu0 %v551
        %824 = vmatpush1.msra.mxu0 %v550
        %825 = vmatprep.subr.mxu0 %v553
        %826 = vmatpush1.msra.mxu0 %v552
        %827 = vmatprep.subr.mxu0 %v555
        %828 = vmatpush1.msra.mxu0 %v554
        %829 = vmatprep.subr.mxu0 %v594
        %830 = vmatpush1.msra.mxu0 %v593
        %831 = vmatprep.subr.mxu0 %v596
        %832 = vmatpush1.msra.mxu0 %v595
        %833 = vmatprep.subr.mxu0 %v598
        %834 = vmatpush1.msra.mxu0 %v597
        %835 = vmatprep.subr.mxu0 %v600
        %836 = vmatpush1.msra.mxu0 %v599
        %837 = vmatprep.subr.mxu0 %v639
        %838 = vmatpush1.msra.mxu0 %v638
        %839 = vmatprep.subr.mxu0 %v641
        %840 = vmatpush1.msra.mxu0 %v640
        %841 = vmatprep.subr.mxu0 %v643
        %842 = vmatpush1.msra.mxu0 %v642
        %843 = vmatprep.subr.mxu0 %v645
        %844 = vmatpush1.msra.mxu0 %v644
        %845 = vmatprep.subr.mxu0 %v684
        %846 = vmatpush1.msra.mxu0 %v683
        %847 = vmatprep.subr.mxu0 %v686
        %848 = vmatpush1.msra.mxu0 %v685
        %849 = vmatprep.subr.mxu0 %v688
        %850 = vmatpush1.msra.mxu0 %v687
        %851 = vmatprep.subr.mxu0 %v690
        %852 = vmatpush1.msra.mxu0 %v689
        %853 = vmatprep.subr.mxu0 %v729
        %854 = vmatpush1.msra.mxu0 %v728
        %855 = vmatprep.subr.mxu0 %v731
        %856 = vmatpush1.msra.mxu0 %v730
        %857 = vmatprep.subr.mxu0 %v733
        %858 = vmatpush1.msra.mxu0 %v732
        %859 = vmatprep.subr.mxu0 %v735
        %860 = vmatpush1.msra.mxu0 %v734
        %861 = vmatprep.mubr.f32.mxu0 %v320
        %862 = vmatmul.mubr.f32.gmra.mrb[0].mxu0 %v319
        %v863 = vpop.f32.mrb[0].mxu0
        %v864 = vadd.f32 0.0, %v863
        %v865 = vpop.f32.mrb[0].mxu0
        %v866 = vadd.f32 0.0, %v865
        %867 = vdwg.mxu0
        %868 = vmatprep.subr.mxu0 %v774
        %869 = vmatpush1.msra.mxu0 %v773
        %870 = vmatprep.subr.mxu0 %v776
        %871 = vmatpush1.msra.mxu0 %v775
        %872 = vmatprep.subr.mxu0 %v778
        %873 = vmatpush1.msra.mxu0 %v777
        %874 = vmatprep.subr.mxu0 %v780
        %875 = vmatpush1.msra.mxu0 %v779
        %876 = vmatprep.subr.mxu0 0.0
        %877 = vmatpush1.msra.mxu0 0.0
        %878 = vmatprep.subr.mxu0 0.0
        %879 = vmatpush1.msra.mxu0 0.0
        %880 = vmatprep.subr.mxu0 0.0
        %881 = vmatpush1.msra.mxu0 0.0
        %882 = vmatprep.subr.mxu0 0.0
        %883 = vmatpush1.msra.mxu0 0.0
        %884 = vmatprep.subr.mxu0 0.0
        %885 = vmatpush1.msra.mxu0 0.0
        %886 = vmatprep.subr.mxu0 0.0
        %887 = vmatpush1.msra.mxu0 0.0
        %888 = vmatprep.subr.mxu0 0.0
        %889 = vmatpush1.msra.mxu0 0.0
        %890 = vmatprep.subr.mxu0 0.0
        %891 = vmatpush1.msra.mxu0 0.0
        %892 = vmatprep.subr.mxu0 0.0
        %893 = vmatpush1.msra.mxu0 0.0
        %894 = vmatprep.subr.mxu0 0.0
        %895 = vmatpush1.msra.mxu0 0.0
        %896 = vmatprep.subr.mxu0 0.0
        %897 = vmatpush1.msra.mxu0 0.0
        %898 = vmatprep.subr.mxu0 0.0
        %899 = vmatpush1.msra.mxu0 0.0
        %900 = vmatprep.subr.mxu0 0.0
        %901 = vmatpush1.msra.mxu0 0.0
        %902 = vmatprep.subr.mxu0 0.0
        %903 = vmatpush1.msra.mxu0 0.0
        %904 = vmatprep.subr.mxu0 0.0
        %905 = vmatpush1.msra.mxu0 0.0
        %906 = vmatprep.subr.mxu0 0.0
        %907 = vmatpush1.msra.mxu0 0.0
        %908 = vmatprep.subr.mxu0 0.0
        %909 = vmatpush1.msra.mxu0 0.0
        %910 = vmatprep.subr.mxu0 0.0
        %911 = vmatpush1.msra.mxu0 0.0
        %912 = vmatprep.subr.mxu0 0.0
        %913 = vmatpush1.msra.mxu0 0.0
        %914 = vmatprep.subr.mxu0 0.0
        %915 = vmatpush1.msra.mxu0 0.0
        %916 = vmatprep.subr.mxu0 0.0
        %917 = vmatpush1.msra.mxu0 0.0
        %918 = vmatprep.subr.mxu0 0.0
        %919 = vmatpush1.msra.mxu0 0.0
        %920 = vmatprep.subr.mxu0 0.0
        %921 = vmatpush1.msra.mxu0 0.0
        %922 = vmatprep.subr.mxu0 0.0
        %923 = vmatpush1.msra.mxu0 0.0
        %924 = vmatprep.subr.mxu0 0.0
        %925 = vmatpush1.msra.mxu0 0.0
        %926 = vmatprep.subr.mxu0 0.0
        %927 = vmatpush1.msra.mxu0 0.0
        %928 = vmatprep.subr.mxu0 0.0
        %929 = vmatpush1.msra.mxu0 0.0
        %930 = vmatprep.subr.mxu0 0.0
        %931 = vmatpush1.msra.mxu0 0.0
        %932 = vmatprep.mubr.f32.mxu0 0.0
        %933 = vmatmul.mubr.f32.gmra.mrb[0].mxu0 %v795
        %v934 = vpop.f32.mrb[0].mxu0
        %v935 = vadd.f32 %v864, %v934
        %v936 = vpop.f32.mrb[0].mxu0
        %v937 = vadd.f32 %v866, %v936
        %938 = vdwg.mxu0
        %939 = vmatprep.subr.mxu0 0.0
        %940 = vmatpush1.msra.mxu0 %v414
        %941 = vmatprep.subr.mxu0 0.0
        %942 = vmatpush1.msra.mxu0 %v324
        %943 = vmatprep.subr.mxu0 0.0
        %944 = vmatpush1.msra.mxu0 %v417
        %945 = vmatprep.subr.mxu0 0.0
        %946 = vmatpush1.msra.mxu0 %v420
        %947 = vmatprep.subr.mxu0 0.0
        %948 = vmatpush1.msra.mxu0 %v438
        %949 = vmatprep.subr.mxu0 0.0
        %950 = vmatpush1.msra.mxu0 %v444
        %951 = vmatprep.subr.mxu0 0.0
        %952 = vmatpush1.msra.mxu0 %v450
        %953 = vmatprep.subr.mxu0 0.0
        %954 = vmatpush1.msra.mxu0 %v456
        %955 = vmatprep.subr.mxu0 0.0
        %956 = vmatpush1.msra.mxu0 %v483
        %957 = vmatprep.subr.mxu0 0.0
        %958 = vmatpush1.msra.mxu0 %v489
        %959 = vmatprep.subr.mxu0 0.0
        %960 = vmatpush1.msra.mxu0 %v495
        %961 = vmatprep.subr.mxu0 0.0
        %962 = vmatpush1.msra.mxu0 %v501
        %963 = vmatprep.subr.mxu0 0.0
        %964 = vmatpush1.msra.mxu0 %v528
        %965 = vmatprep.subr.mxu0 0.0
        %966 = vmatpush1.msra.mxu0 %v534
        %967 = vmatprep.subr.mxu0 0.0
        %968 = vmatpush1.msra.mxu0 %v540
        %969 = vmatprep.subr.mxu0 0.0
        %970 = vmatpush1.msra.mxu0 %v546
        %971 = vmatprep.subr.mxu0 0.0
        %972 = vmatpush1.msra.mxu0 %v573
        %973 = vmatprep.subr.mxu0 0.0
        %974 = vmatpush1.msra.mxu0 %v579
        %975 = vmatprep.subr.mxu0 0.0
        %976 = vmatpush1.msra.mxu0 %v585
        %977 = vmatprep.subr.mxu0 0.0
        %978 = vmatpush1.msra.mxu0 %v591
        %979 = vmatprep.subr.mxu0 0.0
        %980 = vmatpush1.msra.mxu0 %v618
        %981 = vmatprep.subr.mxu0 0.0
        %982 = vmatpush1.msra.mxu0 %v624
        %983 = vmatprep.subr.mxu0 0.0
        %984 = vmatpush1.msra.mxu0 %v630
        %985 = vmatprep.subr.mxu0 0.0
        %986 = vmatpush1.msra.mxu0 %v636
        %987 = vmatprep.subr.mxu0 0.0
        %988 = vmatpush1.msra.mxu0 %v663
        %989 = vmatprep.subr.mxu0 0.0
        %990 = vmatpush1.msra.mxu0 %v669
        %991 = vmatprep.subr.mxu0 0.0
        %992 = vmatpush1.msra.mxu0 %v675
        %993 = vmatprep.subr.mxu0 0.0
        %994 = vmatpush1.msra.mxu0 %v681
        %995 = vmatprep.subr.mxu0 0.0
        %996 = vmatpush1.msra.mxu0 %v708
        %997 = vmatprep.subr.mxu0 0.0
        %998 = vmatpush1.msra.mxu0 %v714
        %999 = vmatprep.subr.mxu0 0.0
        %1000 = vmatpush1.msra.mxu0 %v720
        %1001 = vmatprep.subr.mxu0 0.0
        %1002 = vmatpush1.msra.mxu0 %v726
        %1003 = vmatprep.mubr.f32.mxu0 %v320
        %1004 = vmatmul.mubr.f32.gmra.mrb[0].mxu0 %v319
        %v1005 = vpop.f32.mrb[0].mxu0
        %v1006 = vadd.f32 0.0, %v1005
        %v1007 = vpop.f32.mrb[0].mxu0
        %1008 = vdwg.mxu0
        %1009 = vmatprep.subr.mxu0 0.0
        %1010 = vmatpush1.msra.mxu0 %v753
        %1011 = vmatprep.subr.mxu0 0.0
        %1012 = vmatpush1.msra.mxu0 %v759
        %1013 = vmatprep.subr.mxu0 0.0
        %1014 = vmatpush1.msra.mxu0 %v765
        %1015 = vmatprep.subr.mxu0 0.0
        %1016 = vmatpush1.msra.mxu0 %v771
        %1017 = vmatprep.subr.mxu0 0.0
        %1018 = vmatpush1.msra.mxu0 0.0
        %1019 = vmatprep.subr.mxu0 0.0
        %1020 = vmatpush1.msra.mxu0 0.0
        %1021 = vmatprep.subr.mxu0 0.0
        %1022 = vmatpush1.msra.mxu0 0.0
        %1023 = vmatprep.subr.mxu0 0.0
        %1024 = vmatpush1.msra.mxu0 0.0
        %1025 = vmatprep.subr.mxu0 0.0
        %1026 = vmatpush1.msra.mxu0 0.0
        %1027 = vmatprep.subr.mxu0 0.0
        %1028 = vmatpush1.msra.mxu0 0.0
        %1029 = vmatprep.subr.mxu0 0.0
        %1030 = vmatpush1.msra.mxu0 0.0
        %1031 = vmatprep.subr.mxu0 0.0
        %1032 = vmatpush1.msra.mxu0 0.0
        %1033 = vmatprep.subr.mxu0 0.0
        %1034 = vmatpush1.msra.mxu0 0.0
        %1035 = vmatprep.subr.mxu0 0.0
        %1036 = vmatpush1.msra.mxu0 0.0
        %1037 = vmatprep.subr.mxu0 0.0
        %1038 = vmatpush1.msra.mxu0 0.0
        %1039 = vmatprep.subr.mxu0 0.0
        %1040 = vmatpush1.msra.mxu0 0.0
        %1041 = vmatprep.subr.mxu0 0.0
        %1042 = vmatpush1.msra.mxu0 0.0
        %1043 = vmatprep.subr.mxu0 0.0
        %1044 = vmatpush1.msra.mxu0 0.0
        %1045 = vmatprep.subr.mxu0 0.0
        %1046 = vmatpush1.msra.mxu0 0.0
        %1047 = vmatprep.subr.mxu0 0.0
        %1048 = vmatpush1.msra.mxu0 0.0
        %1049 = vmatprep.subr.mxu0 0.0
        %1050 = vmatpush1.msra.mxu0 0.0
        %1051 = vmatprep.subr.mxu0 0.0
        %1052 = vmatpush1.msra.mxu0 0.0
        %1053 = vmatprep.subr.mxu0 0.0
        %1054 = vmatpush1.msra.mxu0 0.0
        %1055 = vmatprep.subr.mxu0 0.0
        %1056 = vmatpush1.msra.mxu0 0.0
        %1057 = vmatprep.subr.mxu0 0.0
        %1058 = vmatpush1.msra.mxu0 0.0
        %1059 = vmatprep.subr.mxu0 0.0
        %1060 = vmatpush1.msra.mxu0 0.0
        %1061 = vmatprep.subr.mxu0 0.0
        %1062 = vmatpush1.msra.mxu0 0.0
        %1063 = vmatprep.subr.mxu0 0.0
        %1064 = vmatpush1.msra.mxu0 0.0
        %1065 = vmatprep.subr.mxu0 0.0
        %1066 = vmatpush1.msra.mxu0 0.0
        %1067 = vmatprep.subr.mxu0 0.0
        %1068 = vmatpush1.msra.mxu0 0.0
        %1069 = vmatprep.subr.mxu0 0.0
        %1070 = vmatpush1.msra.mxu0 0.0
        %1071 = vmatprep.subr.mxu0 0.0
        %1072 = vmatpush1.msra.mxu0 0.0
        %1073 = vmatprep.mubr.f32.mxu0 0.0
        %1074 = vmatmul.mubr.f32.gmra.mrb[0].mxu0 %v795
        %v1075 = vpop.f32.mrb[0].mxu0
        %v1076 = vadd.f32 %v1006, %v1075
        %v1077 = vpop.f32.mrb[0].mxu0
        %1078 = vdwg.mxu0
        %v1079 = vmul.f32 %v935, %v325
        %v1080 = vmul.f32 %v937, %v326
        %v1081 = vmul.f32 %v1076, %v327
        %v1082 = vadd.f32 %v1079, %v1080
        %v1083 = vsel %vm793, %v1081, 0.0
        %v1084 = vadd.f32 %v1082, %v1083
        %1085 = vadd.xlane.f32.xlu0 %v1084
        %v1086 = vpop.xlane.xlu0 %1085
        %v1087 = vmul.f32 %v1086, 0.00390625
        %v1088 = vsub.f32 %v935, %v1087
        %v1089 = vsub.f32 %v937, %v1087
        %v1090 = vsub.f32 %v1076, %v1087
        %v1091 = vmul.f32 %v1088, %v1088
        %v1092 = vmul.f32 %v1089, %v1089
        %v1093 = vmul.f32 %v1090, %v1090
        %v1094 = vmul.f32 %v1091, %v325
        %v1095 = vmul.f32 %v1092, %v326
        %v1096 = vmul.f32 %v1093, %v327
        %v1097 = vadd.f32 %v1094, %v1095
        %v1098 = vsel %vm793, %v1096, 0.0
        %v1099 = vadd.f32 %v1097, %v1098
        %1100 = vadd.xlane.f32.xlu0 %v1099
        %v1101 = vpop.xlane.xlu0 %1100
        %v1102 = vmul.f32 %v1101, 0.00390625
        %v1103 = vadd.f32 %v1102, 1e-05
        %v1104 = vrsqrt.pop %v1103
        %v1105 = vmul.f32 %v1088, %v1104
        %v1106 = vmul.f32 %v1089, %v1104
        %v1107 = vmul.f32 %v1090, %v1104
        %vm1108 = vcmp.gt.f32.partialorder %v1105, 0.0
        %vm1109 = vcmp.gt.f32.partialorder %v1106, 0.0
        %vm1110 = vcmp.gt.f32.partialorder %v1107, 0.0
        %v1111 = vstv %s318
        %v1112 = vmul.f32 %v1111, %v1105
        %v1113 = vmul.f32 %v1111, %v1106
        %v1114 = vmul.f32 %v1111, %v1107
        %v1115 = vsel %vm1108, %v1105, %v1112
        %v1116 = vsel %vm1109, %v1106, %v1113
        %v1117 = vsel %vm1110, %v1107, %v1114
        %1118 = vst [vmem:[%s317] sm:$0xff] %v1115
        %1119 = vst [vmem:[%s317 + $0x8] sm:$0xff] %v1116
        %1120 = vst.msk [vmem:[%s317 + $0x10] sm:$0xff] %vm793, %v1117
        %s1121 = scalar_lea.vmem %s268, 24 [#allocation6]
        %v1122 = vld [vmem:[%s1121] sm:$0xff]
        %v1123 = vld [vmem:[%s1121 + $0x8] sm:$0xff]
        %v1124 = vld [vmem:[%s1121 + $0x10] sm:$0xff]
        %v1125 = vtanh.pop %v1122
        %v1126 = vtanh.pop %v1123
        %v1127 = vtanh.pop %v1124
        %v1128 = vmul.f32 %v1122, 0.5
        %v1129 = vmul.f32 %v1123, 0.5
        %v1130 = vmul.f32 %v1124, 0.5
        %v1131 = vmul.f32 %v1122, 0.70710677
        %v1132 = vmul.f32 %v1123, 0.70710677
        %v1133 = vmul.f32 %v1124, 0.70710677
        %v1134 = vand.u32 2147483647, %v1131
        %v1135 = vand.u32 2147483647, %v1132
        %v1136 = vand.u32 2147483647, %v1133
        %v1137 = vmul.f32 %v1134, 0.3275911
        %v1138 = vmul.f32 %v1135, 0.3275911
        %v1139 = vmul.f32 %v1136, 0.3275911
        %v1140 = vadd.f32 %v1137, 1.0
        %v1141 = vadd.f32 %v1138, 1.0
        %v1142 = vadd.f32 %v1139, 1.0
        %v1143 = vrcp.pop %v1140
        %v1144 = vmul.f32 1.0, %v1143
        %v1145 = vrcp.pop %v1141
        %v1146 = vmul.f32 1.0, %v1145
        %v1147 = vrcp.pop %v1142
        %v1148 = vmul.f32 1.0, %v1147
        %v1149 = vmul.f32 %v1144, 1.0614054
        %v1150 = vmul.f32 %v1146, 1.0614054
        %v1151 = vmul.f32 %v1148, 1.0614054
        %v1152 = vadd.f32 %v1149, -1.4531521
        %v1153 = vadd.f32 %v1150, -1.4531521
        %v1154 = vadd.f32 %v1151, -1.4531521
        %v1155 = vmul.f32 %v1144, %v1152
        %v1156 = vmul.f32 %v1146, %v1153
        %v1157 = vmul.f32 %v1148, %v1154
        %v1158 = vadd.f32 %v1155, 1.4214138
        %v1159 = vadd.f32 %v1156, 1.4214138
        %v1160 = vadd.f32 %v1157, 1.4214138
        %v1161 = vmul.f32 %v1144, %v1158
        %v1162 = vmul.f32 %v1146, %v1159
        %v1163 = vmul.f32 %v1148, %v1160
        %v1164 = vadd.f32 %v1161, -0.28449672
        %v1165 = vadd.f32 %v1162, -0.28449672
        %v1166 = vadd.f32 %v1163, -0.28449672
        %v1167 = vmul.f32 %v1144, %v1164
        %v1168 = vmul.f32 %v1146, %v1165
        %v1169 = vmul.f32 %v1148, %v1166
        %v1170 = vadd.f32 %v1167, 0.2548296
        %v1171 = vadd.f32 %v1168, 0.2548296
        %v1172 = vadd.f32 %v1169, 0.2548296
        %v1173 = vmul.f32 %v1144, %v1170
        %v1174 = vmul.f32 %v1146, %v1171
        %v1175 = vmul.f32 %v1148, %v1172
        %v1176 = vsub.f32 0.0, %v1134
        %v1177 = vsub.f32 0.0, %v1135
        %v1178 = vsub.f32 0.0, %v1136
        %v1179 = vmul.f32 %v1176, %v1134
        %v1180 = vmul.f32 %v1177, %v1135
        %v1181 = vmul.f32 %v1178, %v1136
        %v1182 = vmul.f32 %v1179, 1.442695
        %v1183 = vpow.pop %v1182
        %v1184 = vmul.f32 %v1180, 1.442695
        %v1185 = vpow.pop %v1184
        %v1186 = vmul.f32 %v1181, 1.442695
        %v1187 = vpow.pop %v1186
        %v1188 = vmul.f32 %v1173, %v1183
        %v1189 = vmul.f32 %v1174, %v1185
        %v1190 = vmul.f32 %v1175, %v1187
        %v1191 = vsub.f32 1.0, %v1188
        %v1192 = vsub.f32 1.0, %v1189
        %v1193 = vsub.f32 1.0, %v1190
        %vm1194 = vcmp.ge.f32.partialorder %v1131, 0.0
        %vm1195 = vcmp.ge.f32.partialorder %v1132, 0.0
        %vm1196 = vcmp.ge.f32.partialorder %v1133, 0.0
        %v1197 = vsub.f32 0.0, %v1191
        %v1198 = vsub.f32 0.0, %v1192
        %v1199 = vsub.f32 0.0, %v1193
        %v1200 = vsel %vm1194, %v1191, %v1197
        %v1201 = vsel %vm1195, %v1192, %v1198
        %v1202 = vsel %vm1196, %v1193, %v1199
        %v1203 = vadd.f32 %v1200, 1.0
        %v1204 = vadd.f32 %v1201, 1.0
        %v1205 = vadd.f32 %v1202, 1.0
        %v1206 = vmul.f32 %v1128, %v1203
        %v1207 = vmul.f32 %v1129, %v1204
        %v1208 = vmul.f32 %v1130, %v1205
        %v1209 = vmul.f32 %v322, %v1125
        %v1210 = vmul.f32 %v323, %v1126
        %v1211 = vmul.f32 %v324, %v1127
        %v1212 = vmul.f32 %v1209, %v1125
        %v1213 = vmul.f32 %v1210, %v1126
        %v1214 = vmul.f32 %v1211, %v1127
        %1224 = vrot.lane.b32.xlu0 %v1206, 127
        %v1225 = vpop.permute.xlu0 %1224
        %1226 = vrot.lane.b32.xlu0 %v1207, 127
        %v1227 = vpop.permute.xlu0 %1226
        %1228 = vrot.lane.b32.xlu0 %v1208, 127
        %v1229 = vpop.permute.xlu0 %1228
        %1230 = vrot.lane.b32.xlu0 %v1209, 127
        %v1231 = vpop.permute.xlu0 %1230
        %1232 = vrot.lane.b32.xlu0 %v1210, 127
        %v1233 = vpop.permute.xlu0 %1232
        %1234 = vrot.lane.b32.xlu0 %v1211, 127
        %v1235 = vpop.permute.xlu0 %1234
        %1236 = vrot.lane.b32.xlu0 %v1212, 127
        %v1237 = vpop.permute.xlu0 %1236
        %1238 = vrot.lane.b32.xlu0 %v1213, 127
        %v1239 = vpop.permute.xlu0 %1238
        %1240 = vrot.lane.b32.xlu0 %v1214, 127
        %v1241 = vpop.permute.xlu0 %1240
        %v1242 = vsel %vm457, %v1225, %v1227
        %v1243 = vsel %vm457, %v1227, %v1229
        %v1244 = vsel %vm457, %v1231, %v1233
        %v1245 = vsel %vm457, %v1233, %v1235
        %v1246 = vsel %vm457, %v1237, %v1239
        %v1247 = vsel %vm457, %v1239, %v1241
        %1257 = vrot.lane.b32.xlu0 %v1206, 126
        %v1258 = vpop.permute.xlu0 %1257
        %1259 = vrot.lane.b32.xlu0 %v1207, 126
        %v1260 = vpop.permute.xlu0 %1259
        %1261 = vrot.lane.b32.xlu0 %v1208, 126
        %v1262 = vpop.permute.xlu0 %1261
        %1263 = vrot.lane.b32.xlu0 %v1209, 126
        %v1264 = vpop.permute.xlu0 %1263
        %1265 = vrot.lane.b32.xlu0 %v1210, 126
        %v1266 = vpop.permute.xlu0 %1265
        %1267 = vrot.lane.b32.xlu0 %v1211, 126
        %v1268 = vpop.permute.xlu0 %1267
        %1269 = vrot.lane.b32.xlu0 %v1212, 126
        %v1270 = vpop.permute.xlu0 %1269
        %1271 = vrot.lane.b32.xlu0 %v1213, 126
        %v1272 = vpop.permute.xlu0 %1271
        %1273 = vrot.lane.b32.xlu0 %v1214, 126
        %v1274 = vpop.permute.xlu0 %1273
        %v1275 = vsel %vm502, %v1258, %v1260
        %v1276 = vsel %vm502, %v1260, %v1262
        %v1277 = vsel %vm502, %v1264, %v1266
        %v1278 = vsel %vm502, %v1266, %v1268
        %v1279 = vsel %vm502, %v1270, %v1272
        %v1280 = vsel %vm502, %v1272, %v1274
        %1290 = vrot.lane.b32.xlu0 %v1206, 110
        %v1291 = vpop.permute.xlu0 %1290
        %1292 = vrot.lane.b32.xlu0 %v1207, 110
        %v1293 = vpop.permute.xlu0 %1292
        %1294 = vrot.lane.b32.xlu0 %v1208, 110
        %v1295 = vpop.permute.xlu0 %1294
        %1296 = vrot.lane.b32.xlu0 %v1209, 110
        %v1297 = vpop.permute.xlu0 %1296
        %1298 = vrot.lane.b32.xlu0 %v1210, 110
        %v1299 = vpop.permute.xlu0 %1298
        %1300 = vrot.lane.b32.xlu0 %v1211, 110
        %v1301 = vpop.permute.xlu0 %1300
        %1302 = vrot.lane.b32.xlu0 %v1212, 110
        %v1303 = vpop.permute.xlu0 %1302
        %1304 = vrot.lane.b32.xlu0 %v1213, 110
        %v1305 = vpop.permute.xlu0 %1304
        %1306 = vrot.lane.b32.xlu0 %v1214, 110
        %v1307 = vpop.permute.xlu0 %1306
        %v1308 = vsel %vm547, %v1291, %v1293
        %v1309 = vsel %vm547, %v1293, %v1295
        %v1310 = vsel %vm547, %v1297, %v1299
        %v1311 = vsel %vm547, %v1299, %v1301
        %v1312 = vsel %vm547, %v1303, %v1305
        %v1313 = vsel %vm547, %v1305, %v1307
        %1323 = vrot.lane.b32.xlu0 %v1206, 109
        %v1324 = vpop.permute.xlu0 %1323
        %1325 = vrot.lane.b32.xlu0 %v1207, 109
        %v1326 = vpop.permute.xlu0 %1325
        %1327 = vrot.lane.b32.xlu0 %v1208, 109
        %v1328 = vpop.permute.xlu0 %1327
        %1329 = vrot.lane.b32.xlu0 %v1209, 109
        %v1330 = vpop.permute.xlu0 %1329
        %1331 = vrot.lane.b32.xlu0 %v1210, 109
        %v1332 = vpop.permute.xlu0 %1331
        %1333 = vrot.lane.b32.xlu0 %v1211, 109
        %v1334 = vpop.permute.xlu0 %1333
        %1335 = vrot.lane.b32.xlu0 %v1212, 109
        %v1336 = vpop.permute.xlu0 %1335
        %1337 = vrot.lane.b32.xlu0 %v1213, 109
        %v1338 = vpop.permute.xlu0 %1337
        %1339 = vrot.lane.b32.xlu0 %v1214, 109
        %v1340 = vpop.permute.xlu0 %1339
        %v1341 = vsel %vm592, %v1324, %v1326
        %v1342 = vsel %vm592, %v1326, %v1328
        %v1343 = vsel %vm592, %v1330, %v1332
        %v1344 = vsel %vm592, %v1332, %v1334
        %v1345 = vsel %vm592, %v1336, %v1338
        %v1346 = vsel %vm592, %v1338, %v1340
        %1356 = vrot.lane.b32.xlu0 %v1206, 108
        %v1357 = vpop.permute.xlu0 %1356
        %1358 = vrot.lane.b32.xlu0 %v1207, 108
        %v1359 = vpop.permute.xlu0 %1358
        %1360 = vrot.lane.b32.xlu0 %v1208, 108
        %v1361 = vpop.permute.xlu0 %1360
        %1362 = vrot.lane.b32.xlu0 %v1209, 108
        %v1363 = vpop.permute.xlu0 %1362
        %1364 = vrot.lane.b32.xlu0 %v1210, 108
        %v1365 = vpop.permute.xlu0 %1364
        %1366 = vrot.lane.b32.xlu0 %v1211, 108
        %v1367 = vpop.permute.xlu0 %1366
        %1368 = vrot.lane.b32.xlu0 %v1212, 108
        %v1369 = vpop.permute.xlu0 %1368
        %1370 = vrot.lane.b32.xlu0 %v1213, 108
        %v1371 = vpop.permute.xlu0 %1370
        %1372 = vrot.lane.b32.xlu0 %v1214, 108
        %v1373 = vpop.permute.xlu0 %1372
        %v1374 = vsel %vm637, %v1357, %v1359
        %v1375 = vsel %vm637, %v1359, %v1361
        %v1376 = vsel %vm637, %v1363, %v1365
        %v1377 = vsel %vm637, %v1365, %v1367
        %v1378 = vsel %vm637, %v1369, %v1371
        %v1379 = vsel %vm637, %v1371, %v1373
        %1389 = vrot.lane.b32.xlu0 %v1206, 92
        %v1390 = vpop.permute.xlu0 %1389
        %1391 = vrot.lane.b32.xlu0 %v1207, 92
        %v1392 = vpop.permute.xlu0 %1391
        %1393 = vrot.lane.b32.xlu0 %v1208, 92
        %v1394 = vpop.permute.xlu0 %1393
        %1395 = vrot.lane.b32.xlu0 %v1209, 92
        %v1396 = vpop.permute.xlu0 %1395
        %1397 = vrot.lane.b32.xlu0 %v1210, 92
        %v1398 = vpop.permute.xlu0 %1397
        %1399 = vrot.lane.b32.xlu0 %v1211, 92
        %v1400 = vpop.permute.xlu0 %1399
        %1401 = vrot.lane.b32.xlu0 %v1212, 92
        %v1402 = vpop.permute.xlu0 %1401
        %1403 = vrot.lane.b32.xlu0 %v1213, 92
        %v1404 = vpop.permute.xlu0 %1403
        %1405 = vrot.lane.b32.xlu0 %v1214, 92
        %v1406 = vpop.permute.xlu0 %1405
        %v1407 = vsel %vm682, %v1390, %v1392
        %v1408 = vsel %vm682, %v1392, %v1394
        %v1409 = vsel %vm682, %v1396, %v1398
        %v1410 = vsel %vm682, %v1398, %v1400
        %v1411 = vsel %vm682, %v1402, %v1404
        %v1412 = vsel %vm682, %v1404, %v1406
        %1422 = vrot.lane.b32.xlu0 %v1206, 91
        %v1423 = vpop.permute.xlu0 %1422
        %1424 = vrot.lane.b32.xlu0 %v1207, 91
        %v1425 = vpop.permute.xlu0 %1424
        %1426 = vrot.lane.b32.xlu0 %v1208, 91
        %v1427 = vpop.permute.xlu0 %1426
        %1428 = vrot.lane.b32.xlu0 %v1209, 91
        %v1429 = vpop.permute.xlu0 %1428
        %1430 = vrot.lane.b32.xlu0 %v1210, 91
        %v1431 = vpop.permute.xlu0 %1430
        %1432 = vrot.lane.b32.xlu0 %v1211, 91
        %v1433 = vpop.permute.xlu0 %1432
        %1434 = vrot.lane.b32.xlu0 %v1212, 91
        %v1435 = vpop.permute.xlu0 %1434
        %1436 = vrot.lane.b32.xlu0 %v1213, 91
        %v1437 = vpop.permute.xlu0 %1436
        %1438 = vrot.lane.b32.xlu0 %v1214, 91
        %v1439 = vpop.permute.xlu0 %1438
        %v1440 = vsel %vm727, %v1423, %v1425
        %v1441 = vsel %vm727, %v1425, %v1427
        %v1442 = vsel %vm727, %v1429, %v1431
        %v1443 = vsel %vm727, %v1431, %v1433
        %v1444 = vsel %vm727, %v1435, %v1437
        %v1445 = vsel %vm727, %v1437, %v1439
        %1455 = vrot.lane.b32.xlu0 %v1206, 90
        %v1456 = vpop.permute.xlu0 %1455
        %1457 = vrot.lane.b32.xlu0 %v1207, 90
        %v1458 = vpop.permute.xlu0 %1457
        %1459 = vrot.lane.b32.xlu0 %v1208, 90
        %v1460 = vpop.permute.xlu0 %1459
        %1461 = vrot.lane.b32.xlu0 %v1209, 90
        %v1462 = vpop.permute.xlu0 %1461
        %1463 = vrot.lane.b32.xlu0 %v1210, 90
        %v1464 = vpop.permute.xlu0 %1463
        %1465 = vrot.lane.b32.xlu0 %v1211, 90
        %v1466 = vpop.permute.xlu0 %1465
        %1467 = vrot.lane.b32.xlu0 %v1212, 90
        %v1468 = vpop.permute.xlu0 %1467
        %1469 = vrot.lane.b32.xlu0 %v1213, 90
        %v1470 = vpop.permute.xlu0 %1469
        %1471 = vrot.lane.b32.xlu0 %v1214, 90
        %v1472 = vpop.permute.xlu0 %1471
        %v1473 = vsel %vm772, %v1456, %v1458
        %v1474 = vsel %vm772, %v1458, %v1460
        %v1475 = vsel %vm772, %v1462, %v1464
        %v1476 = vsel %vm772, %v1464, %v1466
        %v1477 = vsel %vm772, %v1468, %v1470
        %v1478 = vsel %vm772, %v1470, %v1472
        %1488 = vmatprep.subr.mxu0 %v1207
        %1489 = vmatpush1.msra.mxu0 %v1206
        %1490 = vmatprep.subr.mxu0 %v323
        %1491 = vmatpush1.msra.mxu0 %v322
        %1492 = vmatprep.subr.mxu0 %v1210
        %1493 = vmatpush1.msra.mxu0 %v1209
        %1494 = vmatprep.subr.mxu0 %v1213
        %1495 = vmatpush1.msra.mxu0 %v1212
        %1496 = vmatprep.subr.mxu0 %v1243
        %1497 = vmatpush1.msra.mxu0 %v1242
        %1498 = vmatprep.subr.mxu0 %v461
        %1499 = vmatpush1.msra.mxu0 %v460
        %1500 = vmatprep.subr.mxu0 %v1245
        %1501 = vmatpush1.msra.mxu0 %v1244
        %1502 = vmatprep.subr.mxu0 %v1247
        %1503 = vmatpush1.msra.mxu0 %v1246
        %1504 = vmatprep.subr.mxu0 %v1276
        %1505 = vmatpush1.msra.mxu0 %v1275
        %1506 = vmatprep.subr.mxu0 %v506
        %1507 = vmatpush1.msra.mxu0 %v505
        %1508 = vmatprep.subr.mxu0 %v1278
        %1509 = vmatpush1.msra.mxu0 %v1277
        %1510 = vmatprep.subr.mxu0 %v1280
        %1511 = vmatpush1.msra.mxu0 %v1279
        %1512 = vmatprep.subr.mxu0 %v1309
        %1513 = vmatpush1.msra.mxu0 %v1308
        %1514 = vmatprep.subr.mxu0 %v551
        %1515 = vmatpush1.msra.mxu0 %v550
        %1516 = vmatprep.subr.mxu0 %v1311
        %1517 = vmatpush1.msra.mxu0 %v1310
        %1518 = vmatprep.subr.mxu0 %v1313
        %1519 = vmatpush1.msra.mxu0 %v1312
        %1520 = vmatprep.subr.mxu0 %v1342
        %1521 = vmatpush1.msra.mxu0 %v1341
        %1522 = vmatprep.subr.mxu0 %v596
        %1523 = vmatpush1.msra.mxu0 %v595
        %1524 = vmatprep.subr.mxu0 %v1344
        %1525 = vmatpush1.msra.mxu0 %v1343
        %1526 = vmatprep.subr.mxu0 %v1346
        %1527 = vmatpush1.msra.mxu0 %v1345
        %1528 = vmatprep.subr.mxu0 %v1375
        %1529 = vmatpush1.msra.mxu0 %v1374
        %1530 = vmatprep.subr.mxu0 %v641
        %1531 = vmatpush1.msra.mxu0 %v640
        %1532 = vmatprep.subr.mxu0 %v1377
        %1533 = vmatpush1.msra.mxu0 %v1376
        %1534 = vmatprep.subr.mxu0 %v1379
        %1535 = vmatpush1.msra.mxu0 %v1378
        %1536 = vmatprep.subr.mxu0 %v1408
        %1537 = vmatpush1.msra.mxu0 %v1407
        %1538 = vmatprep.subr.mxu0 %v686
        %1539 = vmatpush1.msra.mxu0 %v685
        %1540 = vmatprep.subr.mxu0 %v1410
        %1541 = vmatpush1.msra.mxu0 %v1409
        %1542 = vmatprep.subr.mxu0 %v1412
        %1543 = vmatpush1.msra.mxu0 %v1411
        %1544 = vmatprep.subr.mxu0 %v1441
        %1545 = vmatpush1.msra.mxu0 %v1440
        %1546 = vmatprep.subr.mxu0 %v731
        %1547 = vmatpush1.msra.mxu0 %v730
        %1548 = vmatprep.subr.mxu0 %v1443
        %1549 = vmatpush1.msra.mxu0 %v1442
        %1550 = vmatprep.subr.mxu0 %v1445
        %1551 = vmatpush1.msra.mxu0 %v1444
        %1552 = vmatprep.mubr.f32.mxu0 %v320
        %1553 = vmatmul.mubr.f32.gmra.mrb[0].mxu0 %v319
        %v1554 = vpop.f32.mrb[0].mxu0
        %v1555 = vadd.f32 0.0, %v1554
        %v1556 = vpop.f32.mrb[0].mxu0
        %v1557 = vadd.f32 0.0, %v1556
        %1558 = vdwg.mxu0
        %1559 = vmatprep.subr.mxu0 %v1474
        %1560 = vmatpush1.msra.mxu0 %v1473
        %1561 = vmatprep.subr.mxu0 %v776
        %1562 = vmatpush1.msra.mxu0 %v775
        %1563 = vmatprep.subr.mxu0 %v1476
        %1564 = vmatpush1.msra.mxu0 %v1475
        %1565 = vmatprep.subr.mxu0 %v1478
        %1566 = vmatpush1.msra.mxu0 %v1477
        %1567 = vmatprep.subr.mxu0 0.0
        %1568 = vmatpush1.msra.mxu0 0.0
        %1569 = vmatprep.subr.mxu0 0.0
        %1570 = vmatpush1.msra.mxu0 0.0
        %1571 = vmatprep.subr.mxu0 0.0
        %1572 = vmatpush1.msra.mxu0 0.0
        %1573 = vmatprep.subr.mxu0 0.0
        %1574 = vmatpush1.msra.mxu0 0.0
        %1575 = vmatprep.subr.mxu0 0.0
        %1576 = vmatpush1.msra.mxu0 0.0
        %1577 = vmatprep.subr.mxu0 0.0
        %1578 = vmatpush1.msra.mxu0 0.0
        %1579 = vmatprep.subr.mxu0 0.0
        %1580 = vmatpush1.msra.mxu0 0.0
        %1581 = vmatprep.subr.mxu0 0.0
        %1582 = vmatpush1.msra.mxu0 0.0
        %1583 = vmatprep.subr.mxu0 0.0
        %1584 = vmatpush1.msra.mxu0 0.0
        %1585 = vmatprep.subr.mxu0 0.0
        %1586 = vmatpush1.msra.mxu0 0.0
        %1587 = vmatprep.subr.mxu0 0.0
        %1588 = vmatpush1.msra.mxu0 0.0
        %1589 = vmatprep.subr.mxu0 0.0
        %1590 = vmatpush1.msra.mxu0 0.0
        %1591 = vmatprep.subr.mxu0 0.0
        %1592 = vmatpush1.msra.mxu0 0.0
        %1593 = vmatprep.subr.mxu0 0.0
        %1594 = vmatpush1.msra.mxu0 0.0
        %1595 = vmatprep.subr.mxu0 0.0
        %1596 = vmatpush1.msra.mxu0 0.0
        %1597 = vmatprep.subr.mxu0 0.0
        %1598 = vmatpush1.msra.mxu0 0.0
        %1599 = vmatprep.subr.mxu0 0.0
        %1600 = vmatpush1.msra.mxu0 0.0
        %1601 = vmatprep.subr.mxu0 0.0
        %1602 = vmatpush1.msra.mxu0 0.0
        %1603 = vmatprep.subr.mxu0 0.0
        %1604 = vmatpush1.msra.mxu0 0.0
        %1605 = vmatprep.subr.mxu0 0.0
        %1606 = vmatpush1.msra.mxu0 0.0
        %1607 = vmatprep.subr.mxu0 0.0
        %1608 = vmatpush1.msra.mxu0 0.0
        %1609 = vmatprep.subr.mxu0 0.0
        %1610 = vmatpush1.msra.mxu0 0.0
        %1611 = vmatprep.subr.mxu0 0.0
        %1612 = vmatpush1.msra.mxu0 0.0
        %1613 = vmatprep.subr.mxu0 0.0
        %1614 = vmatpush1.msra.mxu0 0.0
        %1615 = vmatprep.subr.mxu0 0.0
        %1616 = vmatpush1.msra.mxu0 0.0
        %1617 = vmatprep.subr.mxu0 0.0
        %1618 = vmatpush1.msra.mxu0 0.0
        %1619 = vmatprep.subr.mxu0 0.0
        %1620 = vmatpush1.msra.mxu0 0.0
        %1621 = vmatprep.subr.mxu0 0.0
        %1622 = vmatpush1.msra.mxu0 0.0
        %1623 = vmatprep.mubr.f32.mxu0 0.0
        %1624 = vmatmul.mubr.f32.gmra.mrb[0].mxu0 %v795
        %v1625 = vpop.f32.mrb[0].mxu0
        %v1626 = vadd.f32 %v1555, %v1625
        %v1627 = vpop.f32.mrb[0].mxu0
        %v1628 = vadd.f32 %v1557, %v1627
        %1629 = vdwg.mxu0
        %1630 = vmatprep.subr.mxu0 0.0
        %1631 = vmatpush1.msra.mxu0 %v1208
        %1632 = vmatprep.subr.mxu0 0.0
        %1633 = vmatpush1.msra.mxu0 %v324
        %1634 = vmatprep.subr.mxu0 0.0
        %1635 = vmatpush1.msra.mxu0 %v1211
        %1636 = vmatprep.subr.mxu0 0.0
        %1637 = vmatpush1.msra.mxu0 %v1214
        %1638 = vmatprep.subr.mxu0 0.0
        %1639 = vmatpush1.msra.mxu0 %v1229
        %1640 = vmatprep.subr.mxu0 0.0
        %1641 = vmatpush1.msra.mxu0 %v444
        %1642 = vmatprep.subr.mxu0 0.0
        %1643 = vmatpush1.msra.mxu0 %v1235
        %1644 = vmatprep.subr.mxu0 0.0
        %1645 = vmatpush1.msra.mxu0 %v1241
        %1646 = vmatprep.subr.mxu0 0.0
        %1647 = vmatpush1.msra.mxu0 %v1262
        %1648 = vmatprep.subr.mxu0 0.0
        %1649 = vmatpush1.msra.mxu0 %v489
        %1650 = vmatprep.subr.mxu0 0.0
        %1651 = vmatpush1.msra.mxu0 %v1268
        %1652 = vmatprep.subr.mxu0 0.0
        %1653 = vmatpush1.msra.mxu0 %v1274
        %1654 = vmatprep.subr.mxu0 0.0
        %1655 = vmatpush1.msra.mxu0 %v1295
        %1656 = vmatprep.subr.mxu0 0.0
        %1657 = vmatpush1.msra.mxu0 %v534
        %1658 = vmatprep.subr.mxu0 0.0
        %1659 = vmatpush1.msra.mxu0 %v1301
        %1660 = vmatprep.subr.mxu0 0.0
        %1661 = vmatpush1.msra.mxu0 %v1307
        %1662 = vmatprep.subr.mxu0 0.0
        %1663 = vmatpush1.msra.mxu0 %v1328
        %1664 = vmatprep.subr.mxu0 0.0
        %1665 = vmatpush1.msra.mxu0 %v579
        %1666 = vmatprep.subr.mxu0 0.0
        %1667 = vmatpush1.msra.mxu0 %v1334
        %1668 = vmatprep.subr.mxu0 0.0
        %1669 = vmatpush1.msra.mxu0 %v1340
        %1670 = vmatprep.subr.mxu0 0.0
        %1671 = vmatpush1.msra.mxu0 %v1361
        %1672 = vmatprep.subr.mxu0 0.0
        %1673 = vmatpush1.msra.mxu0 %v624
        %1674 = vmatprep.subr.mxu0 0.0
        %1675 = vmatpush1.msra.mxu0 %v1367
        %1676 = vmatprep.subr.mxu0 0.0
        %1677 = vmatpush1.msra.mxu0 %v1373
        %1678 = vmatprep.subr.mxu0 0.0
        %1679 = vmatpush1.msra.mxu0 %v1394
        %1680 = vmatprep.subr.mxu0 0.0
        %1681 = vmatpush1.msra.mxu0 %v669
        %1682 = vmatprep.subr.mxu0 0.0
        %1683 = vmatpush1.msra.mxu0 %v1400
        %1684 = vmatprep.subr.mxu0 0.0
        %1685 = vmatpush1.msra.mxu0 %v1406
        %1686 = vmatprep.subr.mxu0 0.0
        %1687 = vmatpush1.msra.mxu0 %v1427
        %1688 = vmatprep.subr.mxu0 0.0
        %1689 = vmatpush1.msra.mxu0 %v714
        %1690 = vmatprep.subr.mxu0 0.0
        %1691 = vmatpush1.msra.mxu0 %v1433
        %1692 = vmatprep.subr.mxu0 0.0
        %1693 = vmatpush1.msra.mxu0 %v1439
        %1694 = vmatprep.mubr.f32.mxu0 %v320
        %1695 = vmatmul.mubr.f32.gmra.mrb[0].mxu0 %v319
        %v1696 = vpop.f32.mrb[0].mxu0
        %v1697 = vadd.f32 0.0, %v1696
        %v1698 = vpop.f32.mrb[0].mxu0
        %1699 = vdwg.mxu0
        %1700 = vmatprep.subr.mxu0 0.0
        %1701 = vmatpush1.msra.mxu0 %v1460
        %1702 = vmatprep.subr.mxu0 0.0
        %1703 = vmatpush1.msra.mxu0 %v759
        %1704 = vmatprep.subr.mxu0 0.0
        %1705 = vmatpush1.msra.mxu0 %v1466
        %1706 = vmatprep.subr.mxu0 0.0
        %1707 = vmatpush1.msra.mxu0 %v1472
        %1708 = vmatprep.subr.mxu0 0.0
        %1709 = vmatpush1.msra.mxu0 0.0
        %1710 = vmatprep.subr.mxu0 0.0
        %1711 = vmatpush1.msra.mxu0 0.0
        %1712 = vmatprep.subr.mxu0 0.0
        %1713 = vmatpush1.msra.mxu0 0.0
        %1714 = vmatprep.subr.mxu0 0.0
        %1715 = vmatpush1.msra.mxu0 0.0
        %1716 = vmatprep.subr.mxu0 0.0
        %1717 = vmatpush1.msra.mxu0 0.0
        %1718 = vmatprep.subr.mxu0 0.0
        %1719 = vmatpush1.msra.mxu0 0.0
        %1720 = vmatprep.subr.mxu0 0.0
        %1721 = vmatpush1.msra.mxu0 0.0
        %1722 = vmatprep.subr.mxu0 0.0
        %1723 = vmatpush1.msra.mxu0 0.0
        %1724 = vmatprep.subr.mxu0 0.0
        %1725 = vmatpush1.msra.mxu0 0.0
        %1726 = vmatprep.subr.mxu0 0.0
        %1727 = vmatpush1.msra.mxu0 0.0
        %1728 = vmatprep.subr.mxu0 0.0
        %1729 = vmatpush1.msra.mxu0 0.0
        %1730 = vmatprep.subr.mxu0 0.0
        %1731 = vmatpush1.msra.mxu0 0.0
        %1732 = vmatprep.subr.mxu0 0.0
        %1733 = vmatpush1.msra.mxu0 0.0
        %1734 = vmatprep.subr.mxu0 0.0
        %1735 = vmatpush1.msra.mxu0 0.0
        %1736 = vmatprep.subr.mxu0 0.0
        %1737 = vmatpush1.msra.mxu0 0.0
        %1738 = vmatprep.subr.mxu0 0.0
        %1739 = vmatpush1.msra.mxu0 0.0
        %1740 = vmatprep.subr.mxu0 0.0
        %1741 = vmatpush1.msra.mxu0 0.0
        %1742 = vmatprep.subr.mxu0 0.0
        %1743 = vmatpush1.msra.mxu0 0.0
        %1744 = vmatprep.subr.mxu0 0.0
        %1745 = vmatpush1.msra.mxu0 0.0
        %1746 = vmatprep.subr.mxu0 0.0
        %1747 = vmatpush1.msra.mxu0 0.0
        %1748 = vmatprep.subr.mxu0 0.0
        %1749 = vmatpush1.msra.mxu0 0.0
        %1750 = vmatprep.subr.mxu0 0.0
        %1751 = vmatpush1.msra.mxu0 0.0
        %1752 = vmatprep.subr.mxu0 0.0
        %1753 = vmatpush1.msra.mxu0 0.0
        %1754 = vmatprep.subr.mxu0 0.0
        %1755 = vmatpush1.msra.mxu0 0.0
        %1756 = vmatprep.subr.mxu0 0.0
        %1757 = vmatpush1.msra.mxu0 0.0
        %1758 = vmatprep.subr.mxu0 0.0
        %1759 = vmatpush1.msra.mxu0 0.0
        %1760 = vmatprep.subr.mxu0 0.0
        %1761 = vmatpush1.msra.mxu0 0.0
        %1762 = vmatprep.subr.mxu0 0.0
        %1763 = vmatpush1.msra.mxu0 0.0
        %1764 = vmatprep.mubr.f32.mxu0 0.0
        %1765 = vmatmul.mubr.f32.gmra.mrb[0].mxu0 %v795
        %v1766 = vpop.f32.mrb[0].mxu0
        %v1767 = vadd.f32 %v1697, %v1766
        %v1768 = vpop.f32.mrb[0].mxu0
        %1769 = vdwg.mxu0
        %v1770 = vmul.f32 %v1626, %v325
        %v1771 = vmul.f32 %v1628, %v326
        %v1772 = vmul.f32 %v1767, %v327
        %v1773 = vadd.f32 %v1770, %v1771
        %v1774 = vsel %vm793, %v1772, 0.0
        %v1775 = vadd.f32 %v1773, %v1774
        %1776 = vadd.xlane.f32.xlu0 %v1775
        %v1777 = vpop.xlane.xlu0 %1776
        %v1778 = vmul.f32 %v1777, 0.00390625
        %v1779 = vsub.f32 %v1626, %v1778
        %v1780 = vsub.f32 %v1628, %v1778
        %v1781 = vsub.f32 %v1767, %v1778
        %v1782 = vmul.f32 %v1779, %v1779
        %v1783 = vmul.f32 %v1780, %v1780
        %v1784 = vmul.f32 %v1781, %v1781
        %v1785 = vmul.f32 %v1782, %v325
        %v1786 = vmul.f32 %v1783, %v326
        %v1787 = vmul.f32 %v1784, %v327
        %v1788 = vadd.f32 %v1785, %v1786
        %v1789 = vsel %vm793, %v1787, 0.0
        %v1790 = vadd.f32 %v1788, %v1789
        %1791 = vadd.xlane.f32.xlu0 %v1790
        %v1792 = vpop.xlane.xlu0 %1791
        %v1793 = vmul.f32 %v1792, 0.00390625
        %v1794 = vadd.f32 %v1793, 1e-05
        %v1795 = vrsqrt.pop %v1794
        %v1796 = vmul.f32 %v1779, %v1795
        %v1797 = vmul.f32 %v1780, %v1795
        %v1798 = vmul.f32 %v1781, %v1795
        %vm1799 = vcmp.gt.f32.partialorder %v1796, 0.0
        %vm1800 = vcmp.gt.f32.partialorder %v1797, 0.0
        %vm1801 = vcmp.gt.f32.partialorder %v1798, 0.0
        %v1802 = vmul.f32 %v1111, %v1796
        %v1803 = vmul.f32 %v1111, %v1797
        %v1804 = vmul.f32 %v1111, %v1798
        %v1805 = vsel %vm1799, %v1796, %v1802
        %v1806 = vsel %vm1800, %v1797, %v1803
        %v1807 = vsel %vm1801, %v1798, %v1804
        %s1808 = scalar_lea.vmem %s317, 24 [#allocation12]
        %1809 = vst [vmem:[%s1808] sm:$0xff] %v1805
        %1810 = vst [vmem:[%s1808 + $0x8] sm:$0xff] %v1806
        %1811 = vst.msk [vmem:[%s1808 + $0x10] sm:$0xff] %vm793, %v1807
        %s1812 = sand.u32 %s150, 1
        %s1813 = scalar_lea.sflag [#allocation4], %s1812
        %s1814 = sand.u32 %s150, 1
        %s1815 = smul.addr %s1814, 48
        %s1816 = scalar_lea.vmem [#allocation12], %s1815
        // Predicated region
        $region61: #{tpu_custom_call.1} parent=39 // pred_check
          %p1817 = pneg %p160
        $region62: #{tpu_custom_call.1} parent=39 // pred_check_branch
          %1819 = sbr.rel (%p1817) target = $region64
        $region63: #{tpu_custom_call.1} parent=39 // pred_region
          %s1821 = ssub.s32 768, 768
          %1822 = vsyncadd %s1813, %s1821
          %s1823 = smul.addr %s27, 6
          %s1824 = smul.addr %s1823, 128
          %s1825 = scalar_lea.hbm %s5, %s1824
          %s1826 = sshll.u32 %s1816, 4
          %s1827 = int_to_ptr.vmem [resolvable:$true] %s1826
          %1832 = dma.vmem_to_hbm [thread:$0]  %s1827, 768, %s1825, %s1813, 384, 384, 24
        $region64: #{tpu_custom_call.1} parent=39 // pred_fallthru
          _
      $region40: #{tpu_custom_call.1} parent=5 // pred_fallthru
        _
      %p1833 = scmp.le.s32.totalorder 2, %s22
      // Predicated region
      $region65: #{tpu_custom_call.1} parent=5 // pred_check
        %p1834 = pneg %p1833
      $region66: #{tpu_custom_call.1} parent=5 // pred_check_branch
        %1836 = sbr.rel (%p1834) target = $region68
      $region67: #{tpu_custom_call.1} parent=5 // pred_region
        %s1837 = ssub.s32 %s22, 2
        // Predicated region
        $region69: #{tpu_custom_call.1} parent=67 // pred_check
          %p1838 = pneg %p166
        $region70: #{tpu_custom_call.1} parent=67 // pred_check_branch
          %1840 = sbr.rel (%p1838) target = $region72
        $region71: #{tpu_custom_call.1} parent=67 // pred_region
          %s1841 = sand.u32 %s151, 1
          %s1842 = scalar_lea.sflag [#allocation4], %s1841
          %s1843 = sand.u32 %s151, 1
          %s1844 = smul.addr %s1843, 48
          %s1845 = scalar_lea.vmem [#allocation12], %s1844
          %1846 = dma.done %s1842, 768
        $region72: #{tpu_custom_call.1} parent=67 // pred_fallthru
          _
      $region68: #{tpu_custom_call.1} parent=5 // pred_fallthru
        _
    $region6: #{tpu_custom_call.1} parent=1 // loop_footer
      %s26 = sadd.s32 1, %s22
    $region7: #{tpu_custom_call.1} parent=1 // loop_footer_branch
      %21 = sbr.rel target = $region3
    $region8: #{tpu_custom_call.1} parent=1 // loop_exit
      _
    %1847 = vsyncpa [#allocation3], 1
    %s1848 = scalar_lea.sflag [#allocation3], 1
    %1849 = vsyncpa %s1848, 1
    %1850 = vsyncpa [#allocation8], 1
    %1851 = vsyncpa [#allocation11], 1
    %s1852 = scalar_lea.sflag [#allocation11], 1
    %1853 = vsyncpa %s1852, 1
    %1854 = vsyncpa [#allocation4], 1
    %s1855 = scalar_lea.sflag [#allocation4], 1
    %1856 = vsyncpa %s1855, 1
    %1857 = vsyncpa [#allocation5], 1
    %s1858 = scalar_lea.sflag [#allocation5], 1
    %1859 = vsyncpa %s1858, 1

</llo_original>
